<compile_context>
chip_gen: v5e
topology: v5e:2x2
jax: 0.10.0
libtpu: 0.0.40
codegen_flags: <defaults>
</compile_context>

<pallas_src>
import functools

import jax
import jax.numpy as jnp
from jax.experimental import pallas as pl
from jax.experimental.pallas import tpu as pltpu

LN_EPS = 1e-5  # torch.nn.LayerNorm default


def _round_up(x, m):
    return ((x + m - 1) // m) * m


def _vmem_capacity_bytes():
    """Per-core VMEM capacity (generation-aware), with a conservative fallback."""
    try:
        cap = getattr(pltpu.get_tpu_info(), "vmem_capacity_bytes", None)
        if cap:
            return int(cap)
    except Exception:
        pass
    try:
        kind = jax.devices()[0].device_kind.lower()
    except Exception:
        kind = ""
    return (64 << 20) if "v7" in kind else (128 << 20)


def _default_batch_tile():
    """256 rows/tile on 256x256-MXU chips (v6e / v7x), 128 on v5e-class chips."""
    try:
        kind = jax.devices()[0].device_kind.lower()
    except Exception:
        kind = ""
    if "v5e" in kind or "v5 lite" in kind or "v5lite" in kind:
        return 128
    return 256


def _ln_relu(z, gamma, beta):
    """One-pass LayerNorm (var = E[z^2] - mu^2, rsqrt folded into one scale) + ReLU."""
    mu = jnp.mean(z, axis=-1, keepdims=True)
    ms = jnp.mean(z * z, axis=-1, keepdims=True)
    s = jax.lax.rsqrt(ms - mu * mu + LN_EPS)
    scale = s * gamma                      # (TB,1) * (1,H) -> (TB,H)
    shift = beta - mu * scale
    return jnp.maximum(z * scale + shift, 0.0)


def _resident_kernel(n_hidden, unroll_layers,
                     x_ref,     # (TB, H)            f32 activations for this batch tile
                     w_ref,     # (n_hidden, H, H)   bf16 hidden Linear weights (in x out)
                     b_ref,     # (n_hidden, 1, H)   f32 hidden Linear biases
                     g_ref,     # (n_hidden, 1, H)   f32 LayerNorm gammas
                     be_ref,    # (n_hidden, 1, H)   f32 LayerNorm betas
                     wo_ref,    # (H, L_pad)         bf16 final Linear weight (in x out)
                     bo_ref,    # (1, L_pad)         f32 final Linear bias
                     out_ref):  # (TB, L_pad)        f32 logits
    x = x_ref[...]
    res = x                                            # skip connection from the f32 input
    h = jnp.dot(x.astype(jnp.bfloat16), w_ref[0],
                preferred_element_type=jnp.float32) + b_ref[0]

    def hidden_step(k, h, res):
        h_act = _ln_relu(h + res, g_ref[k - 1], be_ref[k - 1])
        h_new = jnp.dot(h_act.astype(jnp.bfloat16), w_ref[k],
                        preferred_element_type=jnp.float32) + b_ref[k]
        return h_new, h_act

    if unroll_layers:
        for k in range(1, n_hidden):                   # shallow towers: static unroll
            h, res = hidden_step(k, h, res)
    else:                                              # deep towers: bound live ranges
        h, res = jax.lax.fori_loop(1, n_hidden,
                                   lambda k, c: hidden_step(k, *c),
                                   (h, res), unroll=2)

    h_act = _ln_relu(h + res, g_ref[n_hidden - 1], be_ref[n_hidden - 1])
    out_ref[...] = (jnp.dot(h_act.astype(jnp.bfloat16), wo_ref[...],
                            preferred_element_type=jnp.float32)
                    + bo_ref[...]).astype(out_ref.dtype)


def _streaming_kernel(x_ref,     # (TB, H)     f32
                      w_ref,     # (1, H, H)   bf16, layer min(k, n_hidden-1)
                      b_ref,     # (1, 1, H)   f32,  layer min(k, n_hidden-1)
                      g_ref,     # (1, 1, H)   f32,  layer max(k-1, 0)
                      be_ref,    # (1, 1, H)   f32,  layer max(k-1, 0)
                      wo_ref,    # (H, L_pad)  bf16
                      bo_ref,    # (1, L_pad)  f32
                      out_ref,   # (TB, L_pad) f32
                      h_acc,     # (TB, H) f32 scratch: pre-activation carried across layers
                      res_acc):  # (TB, H) f32 scratch: skip connection
    k = pl.program_id(1)
    last = pl.num_programs(1) - 1

    @pl.when(k == 0)
    def _():
        x = x_ref[...]
        res_acc[...] = x
        h_acc[...] = jnp.dot(x.astype(jnp.bfloat16), w_ref[0],
                             preferred_element_type=jnp.float32) + b_ref[0]

    @pl.when(k > 0)
    def _():
        h_act = _ln_relu(h_acc[...] + res_acc[...], g_ref[0], be_ref[0])
        h_bf = h_act.astype(jnp.bfloat16)

        @pl.when(k < last)
        def _():
            res_acc[...] = h_act
            h_acc[...] = jnp.dot(h_bf, w_ref[0],
                                 preferred_element_type=jnp.float32) + b_ref[0]

        @pl.when(k == last)
        def _():
            out_ref[...] = (jnp.dot(h_bf, wo_ref[...],
                                    preferred_element_type=jnp.float32)
                            + bo_ref[...]).astype(out_ref.dtype)


def learner_nn_forward(features, params, *, n_hidden, batch_tile=None, force_stream=False):
    """features: (B, H) f32 -> logits (B, num_labels) f32 (LearnerNN.forward, eval mode)."""
    assert n_hidden >= 1
    W, b, gamma, beta, Wo, bo = params
    B, H = features.shape
    L = Wo.shape[1]

    # lane-dense output: pad num_labels to a multiple of 128 (zero columns, sliced off)
    L_pad = _round_up(L, 128)
    if L_pad != L:
        Wo = jnp.pad(Wo, ((0, 0), (0, L_pad - L)))
        bo = jnp.pad(bo, ((0, 0), (0, L_pad - L)))

    # batch tile: generation-aware default, multiple of 16 (clean bf16 sublane packing),
    # and a single grid step when B is small.
    if batch_tile is None:
        batch_tile = _default_batch_tile()
    TB = min(batch_tile, _round_up(B, 16))
    B_pad = _round_up(B, TB)
    x = features.astype(jnp.float32)
    if B_pad != B:
        x = jnp.pad(x, ((0, B_pad - B), (0, 0)))   # padded rows: LN var=0, rsqrt(eps) finite

    Wb = W.astype(jnp.bfloat16)
    Wob = Wo.astype(jnp.bfloat16)
    # (n_hidden, 1, H) so a dynamic / streamed layer index hits the untiled leading dim
    b3 = b.reshape(n_hidden, 1, H).astype(jnp.float32)
    g3 = gamma.reshape(n_hidden, 1, H).astype(jnp.float32)
    be3 = beta.reshape(n_hidden, 1, H).astype(jnp.float32)
    bo2 = bo.reshape(1, L_pad).astype(jnp.float32)

    n_tiles = B_pad // TB
    H_l = _round_up(H, 128)

    # ---- generation-aware VMEM budgeting ------------------------------------------------
    budget = min(int(0.8 * _vmem_capacity_bytes()), 112 << 20)
    weight_bytes = (n_hidden * H * H_l * 2           # W (bf16, single-buffered)
                    + 3 * n_hidden * 8 * H_l * 4     # b / gamma / beta ((8,128)-padded tiles)
                    + H * L_pad * 2 + 8 * L_pad * 4)  # Wo / bo
    act_bytes = (2 * TB * H_l * 4                    # x (f32, double-buffered)
                 + 2 * TB * L_pad * 4                # out (double-buffered)
                 + 6 * TB * H_l * 4)                 # f32 temporaries headroom
    use_stream = force_stream or (weight_bytes + act_bytes + (4 << 20) > budget)

    cost = pl.CostEstimate(
        flops=int(2 * B_pad * H * H * n_hidden + 2 * B_pad * H * L_pad
                  + 10 * B_pad * H * n_hidden),
        transcendentals=int(B_pad * n_hidden),       # one rsqrt per row per LayerNorm
        bytes_accessed=int(B_pad * H * 4 + n_hidden * H * H * 2 + 3 * n_hidden * H * 4
                           + H * L_pad * 2 + L_pad * 4 + B_pad * L_pad * 4))

    def _call(single_buffer):
        def inv(shape, index_map):
            # grid-invariant operand: single-buffer so double-buffering does not burn VMEM
            if single_buffer:
                return pl.BlockSpec(shape, index_map, pipeline_mode=pl.Buffered(1))
            return pl.BlockSpec(shape, index_map)

        if not use_stream:
            # ---------------- resident-weight path ----------------
            vmem_limit = max(32 << 20, min(weight_bytes + act_bytes + (8 << 20), budget))
            kernel = functools.partial(_resident_kernel, n_hidden, n_hidden <= 4)
            return pl.pallas_call(
                kernel,
                out_shape=jax.ShapeDtypeStruct((B_pad, L_pad), jnp.float32),
                grid=(n_tiles,),
                in_specs=[
                    pl.BlockSpec((TB, H), lambda i: (i, 0)),
                    inv((n_hidden, H, H), lambda i: (0, 0, 0)),
                    inv((n_hidden, 1, H), lambda i: (0, 0, 0)),
                    inv((n_hidden, 1, H), lambda i: (0, 0, 0)),
                    inv((n_hidden, 1, H), lambda i: (0, 0, 0)),
                    inv((H, L_pad), lambda i: (0, 0)),
                    inv((1, L_pad), lambda i: (0, 0)),
                ],
                out_specs=pl.BlockSpec((TB, L_pad), lambda i: (i, 0)),
                compiler_params=pltpu.CompilerParams(
                    dimension_semantics=("parallel",),
                    vmem_limit_bytes=int(vmem_limit)),
                cost_estimate=cost,
            )(x, Wb, b3, g3, be3, Wob, bo2)

        # ---------------- weight-streaming path (layer axis on the grid) ----------------
        stream_bytes = (2 * (H * H_l * 2 + 3 * 8 * H_l * 4)       # per-layer W/b/g/beta x2 bufs
                        + H * L_pad * 2 + 8 * L_pad * 4           # Wo / bo
                        + 2 * TB * H_l * 4 + 2 * TB * L_pad * 4   # x / out
                        + 2 * TB * H_l * 4                        # h / res scratch
                        + 6 * TB * H_l * 4)                       # temporaries headroom
        vmem_limit = max(32 << 20, min(stream_bytes + (8 << 20), budget))
        nh = n_hidden
        return pl.pallas_call(
            _streaming_kernel,
            out_shape=jax.ShapeDtypeStruct((B_pad, L_pad), jnp.float32),
            grid=(n_tiles, n_hidden + 1),
            in_specs=[
                pl.BlockSpec((TB, H), lambda i, k: (i, 0)),
                pl.BlockSpec((1, H, H), lambda i, k: (jnp.minimum(k, nh - 1), 0, 0)),
                pl.BlockSpec((1, 1, H), lambda i, k: (jnp.minimum(k, nh - 1), 0, 0)),
                pl.BlockSpec((1, 1, H), lambda i, k: (jnp.maximum(k - 1, 0), 0, 0)),
                pl.BlockSpec((1, 1, H), lambda i, k: (jnp.maximum(k - 1, 0), 0, 0)),
                inv((H, L_pad), lambda i, k: (0, 0)),
                inv((1, L_pad), lambda i, k: (0, 0)),
            ],
            out_specs=pl.BlockSpec((TB, L_pad), lambda i, k: (i, 0)),
            scratch_shapes=[pltpu.VMEM((TB, H), jnp.float32),
                            pltpu.VMEM((TB, H), jnp.float32)],
            compiler_params=pltpu.CompilerParams(
                dimension_semantics=("parallel", "arbitrary"),
                vmem_limit_bytes=int(vmem_limit)),
            cost_estimate=cost,
        )(x, Wb, b3, g3, be3, Wob, bo2)

    try:
        out = _call(True)
    except Exception:
        # pl.Buffered(1) unsupported by this jax build -> fall back to default buffering
        out = _call(False)

    return out[:B, :L]


def init_params(key, hidden_size, num_labels, n_hidden):
    """Deterministic init mimicking torch.nn.Linear defaults (U[-1/sqrt(fan_in), +]).
    Hidden Linear weights are stored as (in, out) so the kernel computes x @ W directly."""
    ks = jax.random.split(key, 4)
    lim = 1.0 / jnp.sqrt(hidden_size)
    W = jax.random.uniform(ks[0], (n_hidden, hidden_size, hidden_size),
                           jnp.float32, -lim, lim)
    b = jax.random.uniform(ks[1], (n_hidden, hidden_size), jnp.float32, -lim, lim)
    gamma = jnp.ones((n_hidden, hidden_size), jnp.float32)
    beta = jnp.zeros((n_hidden, hidden_size), jnp.float32)
    Wo = jax.random.uniform(ks[2], (hidden_size, num_labels), jnp.float32, -lim, lim)
    bo = jax.random.uniform(ks[3], (1, num_labels), jnp.float32, -lim, lim)
    return W, b, gamma, beta, Wo, bo


def reference_forward(features, params, *, n_hidden):
    """Pure-JAX f32 reference mirroring the PyTorch forward (dropout = identity)."""
    W, b, gamma, beta, Wo, bo = params
    res = features
    h = features @ W[0] + b[0]
    for k in range(1, n_hidden + 1):
        z = h + res
        mu = jnp.mean(z, axis=-1, keepdims=True)
        var = jnp.mean((z - mu) ** 2, axis=-1, keepdims=True)
        h = jnp.maximum((z - mu) * jax.lax.rsqrt(var + LN_EPS) * gamma[k - 1] + beta[k - 1], 0.0)
        res = h
        h = (h @ W[k] + b[k]) if k < n_hidden else (h @ Wo + bo)
    return h


def reference_forward_bf16(features, params, *, n_hidden):
    """Reference matching the kernel numerics (bf16 MXU operands, f32 accumulation,
    f32 residual from the f32 input, one-pass folded LayerNorm)."""
    W, b, gamma, beta, Wo, bo = params
    Wb = W.astype(jnp.bfloat16)
    Wob = Wo.astype(jnp.bfloat16)
    x = features.astype(jnp.float32)
    res = x
    h = jnp.dot(x.astype(jnp.bfloat16), Wb[0], preferred_element_type=jnp.float32) + b[0]
    for k in range(1, n_hidden + 1):
        z = h + res
        mu = jnp.mean(z, axis=-1, keepdims=True)
        ms = jnp.mean(z * z, axis=-1, keepdims=True)
        s = jax.lax.rsqrt(ms - mu * mu + LN_EPS)
        scale = s * gamma[k - 1]
        shift = beta[k - 1] - mu * scale
        h = jnp.maximum(z * scale + shift, 0.0)
        res = h
        hb = h.astype(jnp.bfloat16)
        if k < n_hidden:
            h = jnp.dot(hb, Wb[k], preferred_element_type=jnp.float32) + b[k]
        else:
            h = jnp.dot(hb, Wob, preferred_element_type=jnp.float32) + bo
    return h


if __name__ == "__main__":
    B, H, L = 8, 128, 4
    key = jax.random.PRNGKey(0)
    k_x, k_p = jax.random.split(key)
    x = jax.random.normal(k_x, (B, H), jnp.float32)

    # 1) shallow tower: resident weights, statically unrolled layers
    params2 = init_params(k_p, H, L, 2)
    logits = jax.block_until_ready(learner_nn_forward(x, params2, n_hidden=2))
    assert logits.shape == (B, L)
    assert jnp.max(jnp.abs(logits - reference_forward_bf16(x, params2, n_hidden=2))) < 2e-3, \
        "mismatch vs bf16-emulating reference"
    assert jnp.max(jnp.abs(logits - reference_forward(x, params2, n_hidden=2))) < 1e-1, \
        "mismatch vs f32 reference (bf16 MXU operands)"

    # 2) deeper tower: resident weights, rolled lax.fori_loop body (bounded live ranges)
    params6 = init_params(k_p, H, L, 6)
    logits6 = jax.block_until_ready(learner_nn_forward(x, params6, n_hidden=6))
    assert jnp.max(jnp.abs(logits6 - reference_forward_bf16(x, params6, n_hidden=6))) < 2e-3, \
        "fori_loop path mismatch"

    # 3) weight-streaming path (layer grid axis), forced so it is exercised at small shapes
    logits_s = jax.block_until_ready(
        learner_nn_forward(x, params6, n_hidden=6, force_stream=True))
    assert jnp.max(jnp.abs(logits_s - reference_forward_bf16(x, params6, n_hidden=6))) < 2e-3, \
        "streaming path mismatch"

    # TODO(synk): training-mode Dropout(0.5) and the optional targets/loss branch
    # (mse / cross-entropy) are not implemented (inference semantics only).
    print("KERNEL_OK")
</pallas_src>

<mosaic_0001>
module attributes {stable_mosaic.version = 11 : i64} {
  func.func @_resident_kernel(%arg0: i32, %arg1: memref<16x128xf32, #tpu.memory_space<vmem>>, %arg2: memref<2x128x128xbf16, #tpu.memory_space<vmem>>, %arg3: memref<2x1x128xf32, #tpu.memory_space<vmem>>, %arg4: memref<2x1x128xf32, #tpu.memory_space<vmem>>, %arg5: memref<2x1x128xf32, #tpu.memory_space<vmem>>, %arg6: memref<128x128xbf16, #tpu.memory_space<vmem>>, %arg7: memref<1x128xf32, #tpu.memory_space<vmem>>, %arg8: memref<16x128xf32, #tpu.memory_space<vmem>>) attributes {dimension_semantics = [#tpu.dimension_semantics<parallel>], iteration_bounds = array<i64: 1>, scalar_prefetch = 0 : i64, scratch_operands = 0 : i64, tpu.core_type = #tpu.core_type<tc>, window_params = [{transform_indices = @transform_0, window_bounds = array<i64: 16, 128>}, {pipeline_mode = #tpu.pipeline_mode<synchronous>, transform_indices = @transform_1, window_bounds = array<i64: 2, 128, 128>}, {pipeline_mode = #tpu.pipeline_mode<synchronous>, transform_indices = @transform_2, window_bounds = array<i64: 2, 1, 128>}, {pipeline_mode = #tpu.pipeline_mode<synchronous>, transform_indices = @transform_3, window_bounds = array<i64: 2, 1, 128>}, {pipeline_mode = #tpu.pipeline_mode<synchronous>, transform_indices = @transform_4, window_bounds = array<i64: 2, 1, 128>}, {pipeline_mode = #tpu.pipeline_mode<synchronous>, transform_indices = @transform_5, window_bounds = array<i64: 128, 128>}, {pipeline_mode = #tpu.pipeline_mode<synchronous>, transform_indices = @transform_6, window_bounds = array<i64: 1, 128>}, {transform_indices = @transform_7, window_bounds = array<i64: 16, 128>}]} {
    %c0 = arith.constant 0 : index
    %c0_0 = arith.constant 0 : index
    %0 = vector.load %arg1[%c0, %c0_0] : memref<16x128xf32, #tpu.memory_space<vmem>>, vector<16x128xf32>
    %1 = arith.truncf %0 : vector<16x128xf32> to vector<16x128xbf16>
    %c0_1 = arith.constant 0 : index
    %c0_2 = arith.constant 0 : index
    %c0_3 = arith.constant 0 : index
    %2 = vector.load %arg2[%c0_1, %c0_2, %c0_3] : memref<2x128x128xbf16, #tpu.memory_space<vmem>>, vector<1x128x128xbf16>
    %3 = vector.shape_cast %2 : vector<1x128x128xbf16> to vector<128x128xbf16>
    %cst = arith.constant dense<0.000000e+00> : vector<16x128xf32>
    %4 = tpu.matmul %1, %3, %cst {dimension_numbers = #tpu.dot_dimension_numbers<[1], [0], [0], [1], [0, 0, 1, 1], [], []>} : vector<16x128xbf16>, vector<128x128xbf16>, vector<16x128xf32> -> vector<16x128xf32>
    %c0_4 = arith.constant 0 : index
    %c0_5 = arith.constant 0 : index
    %c0_6 = arith.constant 0 : index
    %5 = vector.load %arg3[%c0_4, %c0_5, %c0_6] : memref<2x1x128xf32, #tpu.memory_space<vmem>>, vector<1x1x128xf32>
    %6 = vector.shape_cast %5 : vector<1x1x128xf32> to vector<1x128xf32>
    %7 = vector.broadcast %6 : vector<1x128xf32> to vector<16x128xf32>
    %8 = arith.addf %4, %7 : vector<16x128xf32>
    %9 = arith.addf %8, %0 : vector<16x128xf32>
    %c0_7 = arith.constant 0 : index
    %c0_8 = arith.constant 0 : index
    %c0_9 = arith.constant 0 : index
    %10 = vector.load %arg4[%c0_7, %c0_8, %c0_9] : memref<2x1x128xf32, #tpu.memory_space<vmem>>, vector<1x1x128xf32>
    %11 = vector.shape_cast %10 : vector<1x1x128xf32> to vector<1x128xf32>
    %c0_10 = arith.constant 0 : index
    %c0_11 = arith.constant 0 : index
    %c0_12 = arith.constant 0 : index
    %12 = vector.load %arg5[%c0_10, %c0_11, %c0_12] : memref<2x1x128xf32, #tpu.memory_space<vmem>>, vector<1x1x128xf32>
    %13 = vector.shape_cast %12 : vector<1x1x128xf32> to vector<1x128xf32>
    %cst_13 = arith.constant dense<0.000000e+00> : vector<16xf32>
    %14 = vector.multi_reduction <add>, %9, %cst_13 [1] : vector<16x128xf32> to vector<16xf32>
    %15 = vector.shape_cast %14 : vector<16xf32> to vector<16x1xf32>
    %cst_14 = arith.constant 1.280000e+02 : f32
    %16 = vector.broadcast %cst_14 : f32 to vector<16x1xf32>
    %17 = arith.divf %15, %16 : vector<16x1xf32>
    %18 = arith.mulf %9, %9 : vector<16x128xf32>
    %cst_15 = arith.constant dense<0.000000e+00> : vector<16xf32>
    %19 = vector.multi_reduction <add>, %18, %cst_15 [1] : vector<16x128xf32> to vector<16xf32>
    %20 = vector.shape_cast %19 : vector<16xf32> to vector<16x1xf32>
    %cst_16 = arith.constant 1.280000e+02 : f32
    %21 = vector.broadcast %cst_16 : f32 to vector<16x1xf32>
    %22 = arith.divf %20, %21 : vector<16x1xf32>
    %23 = arith.mulf %17, %17 : vector<16x1xf32>
    %24 = arith.subf %22, %23 : vector<16x1xf32>
    %cst_17 = arith.constant 9.99999974E-6 : f32
    %25 = vector.broadcast %cst_17 : f32 to vector<16x1xf32>
    %26 = arith.addf %24, %25 : vector<16x1xf32>
    %27 = math.rsqrt %26 : vector<16x1xf32>
    %28 = vector.broadcast %27 : vector<16x1xf32> to vector<16x128xf32>
    %29 = vector.broadcast %11 : vector<1x128xf32> to vector<16x128xf32>
    %30 = arith.mulf %28, %29 : vector<16x128xf32>
    %31 = vector.broadcast %17 : vector<16x1xf32> to vector<16x128xf32>
    %32 = arith.mulf %31, %30 : vector<16x128xf32>
    %33 = vector.broadcast %13 : vector<1x128xf32> to vector<16x128xf32>
    %34 = arith.subf %33, %32 : vector<16x128xf32>
    %35 = arith.mulf %9, %30 : vector<16x128xf32>
    %36 = arith.addf %35, %34 : vector<16x128xf32>
    %cst_18 = arith.constant 0.000000e+00 : f32
    %37 = vector.broadcast %cst_18 : f32 to vector<16x128xf32>
    %38 = arith.maximumf %36, %37 : vector<16x128xf32>
    %39 = arith.truncf %38 : vector<16x128xf32> to vector<16x128xbf16>
    %c1 = arith.constant 1 : index
    %c0_19 = arith.constant 0 : index
    %c0_20 = arith.constant 0 : index
    %40 = vector.load %arg2[%c1, %c0_19, %c0_20] : memref<2x128x128xbf16, #tpu.memory_space<vmem>>, vector<1x128x128xbf16>
    %41 = vector.shape_cast %40 : vector<1x128x128xbf16> to vector<128x128xbf16>
    %cst_21 = arith.constant dense<0.000000e+00> : vector<16x128xf32>
    %42 = tpu.matmul %39, %41, %cst_21 {dimension_numbers = #tpu.dot_dimension_numbers<[1], [0], [0], [1], [0, 0, 1, 1], [], []>} : vector<16x128xbf16>, vector<128x128xbf16>, vector<16x128xf32> -> vector<16x128xf32>
    %c1_22 = arith.constant 1 : index
    %c0_23 = arith.constant 0 : index
    %c0_24 = arith.constant 0 : index
    %43 = vector.load %arg3[%c1_22, %c0_23, %c0_24] : memref<2x1x128xf32, #tpu.memory_space<vmem>>, vector<1x1x128xf32>
    %44 = vector.shape_cast %43 : vector<1x1x128xf32> to vector<1x128xf32>
    %45 = vector.broadcast %44 : vector<1x128xf32> to vector<16x128xf32>
    %46 = arith.addf %42, %45 : vector<16x128xf32>
    %47 = arith.addf %46, %38 : vector<16x128xf32>
    %c1_25 = arith.constant 1 : index
    %c0_26 = arith.constant 0 : index
    %c0_27 = arith.constant 0 : index
    %48 = vector.load %arg4[%c1_25, %c0_26, %c0_27] : memref<2x1x128xf32, #tpu.memory_space<vmem>>, vector<1x1x128xf32>
    %49 = vector.shape_cast %48 : vector<1x1x128xf32> to vector<1x128xf32>
    %c1_28 = arith.constant 1 : index
    %c0_29 = arith.constant 0 : index
    %c0_30 = arith.constant 0 : index
    %50 = vector.load %arg5[%c1_28, %c0_29, %c0_30] : memref<2x1x128xf32, #tpu.memory_space<vmem>>, vector<1x1x128xf32>
    %51 = vector.shape_cast %50 : vector<1x1x128xf32> to vector<1x128xf32>
    %cst_31 = arith.constant dense<0.000000e+00> : vector<16xf32>
    %52 = vector.multi_reduction <add>, %47, %cst_31 [1] : vector<16x128xf32> to vector<16xf32>
    %53 = vector.shape_cast %52 : vector<16xf32> to vector<16x1xf32>
    %cst_32 = arith.constant 1.280000e+02 : f32
    %54 = vector.broadcast %cst_32 : f32 to vector<16x1xf32>
    %55 = arith.divf %53, %54 : vector<16x1xf32>
    %56 = arith.mulf %47, %47 : vector<16x128xf32>
    %cst_33 = arith.constant dense<0.000000e+00> : vector<16xf32>
    %57 = vector.multi_reduction <add>, %56, %cst_33 [1] : vector<16x128xf32> to vector<16xf32>
    %58 = vector.shape_cast %57 : vector<16xf32> to vector<16x1xf32>
    %cst_34 = arith.constant 1.280000e+02 : f32
    %59 = vector.broadcast %cst_34 : f32 to vector<16x1xf32>
    %60 = arith.divf %58, %59 : vector<16x1xf32>
    %61 = arith.mulf %55, %55 : vector<16x1xf32>
    %62 = arith.subf %60, %61 : vector<16x1xf32>
    %cst_35 = arith.constant 9.99999974E-6 : f32
    %63 = vector.broadcast %cst_35 : f32 to vector<16x1xf32>
    %64 = arith.addf %62, %63 : vector<16x1xf32>
    %65 = math.rsqrt %64 : vector<16x1xf32>
    %66 = vector.broadcast %65 : vector<16x1xf32> to vector<16x128xf32>
    %67 = vector.broadcast %49 : vector<1x128xf32> to vector<16x128xf32>
    %68 = arith.mulf %66, %67 : vector<16x128xf32>
    %69 = vector.broadcast %55 : vector<16x1xf32> to vector<16x128xf32>
    %70 = arith.mulf %69, %68 : vector<16x128xf32>
    %71 = vector.broadcast %51 : vector<1x128xf32> to vector<16x128xf32>
    %72 = arith.subf %71, %70 : vector<16x128xf32>
    %73 = arith.mulf %47, %68 : vector<16x128xf32>
    %74 = arith.addf %73, %72 : vector<16x128xf32>
    %cst_36 = arith.constant 0.000000e+00 : f32
    %75 = vector.broadcast %cst_36 : f32 to vector<16x128xf32>
    %76 = arith.maximumf %74, %75 : vector<16x128xf32>
    %77 = arith.truncf %76 : vector<16x128xf32> to vector<16x128xbf16>
    %c0_37 = arith.constant 0 : index
    %c0_38 = arith.constant 0 : index
    %78 = vector.load %arg6[%c0_37, %c0_38] : memref<128x128xbf16, #tpu.memory_space<vmem>>, vector<128x128xbf16>
    %cst_39 = arith.constant dense<0.000000e+00> : vector<16x128xf32>
    %79 = tpu.matmul %77, %78, %cst_39 {dimension_numbers = #tpu.dot_dimension_numbers<[1], [0], [0], [1], [0, 0, 1, 1], [], []>} : vector<16x128xbf16>, vector<128x128xbf16>, vector<16x128xf32> -> vector<16x128xf32>
    %c0_40 = arith.constant 0 : index
    %c0_41 = arith.constant 0 : index
    %80 = vector.load %arg7[%c0_40, %c0_41] : memref<1x128xf32, #tpu.memory_space<vmem>>, vector<1x128xf32>
    %81 = vector.broadcast %80 : vector<1x128xf32> to vector<16x128xf32>
    %82 = arith.addf %79, %81 : vector<16x128xf32>
    %c0_42 = arith.constant 0 : index
    %c0_43 = arith.constant 0 : index
    %83 = vector.load %arg8[%c0_42, %c0_43] : memref<16x128xf32, #tpu.memory_space<vmem>>, vector<16x128xf32>
    tpu.vector_store %arg8[%c0_42, %c0_43], %82 {strides = array<i32>} : memref<16x128xf32, #tpu.memory_space<vmem>>, vector<16x128xf32>,
    return
  }
  func.func @transform_0(%arg0: i32) -> (i32, i32) {
    %c0_i32 = arith.constant 0 : i32
    %c0_i32_0 = arith.constant 0 : i32
    return %arg0, %c0_i32 : i32, i32
  }
  func.func @transform_1(%arg0: i32) -> (i32, i32, i32) {
    %c0_i32 = arith.constant 0 : i32
    %c0_i32_0 = arith.constant 0 : i32
    %c0_i32_1 = arith.constant 0 : i32
    %c0_i32_2 = arith.constant 0 : i32
    return %c0_i32, %c0_i32_0, %c0_i32_1 : i32, i32, i32
  }
  func.func @transform_2(%arg0: i32) -> (i32, i32, i32) {
    %c0_i32 = arith.constant 0 : i32
    %c0_i32_0 = arith.constant 0 : i32
    %c0_i32_1 = arith.constant 0 : i32
    %c0_i32_2 = arith.constant 0 : i32
    return %c0_i32, %c0_i32_0, %c0_i32_1 : i32, i32, i32
  }
  func.func @transform_3(%arg0: i32) -> (i32, i32, i32) {
    %c0_i32 = arith.constant 0 : i32
    %c0_i32_0 = arith.constant 0 : i32
    %c0_i32_1 = arith.constant 0 : i32
    %c0_i32_2 = arith.constant 0 : i32
    return %c0_i32, %c0_i32_0, %c0_i32_1 : i32, i32, i32
  }
  func.func @transform_4(%arg0: i32) -> (i32, i32, i32) {
    %c0_i32 = arith.constant 0 : i32
    %c0_i32_0 = arith.constant 0 : i32
    %c0_i32_1 = arith.constant 0 : i32
    %c0_i32_2 = arith.constant 0 : i32
    return %c0_i32, %c0_i32_0, %c0_i32_1 : i32, i32, i32
  }
  func.func @transform_5(%arg0: i32) -> (i32, i32) {
    %c0_i32 = arith.constant 0 : i32
    %c0_i32_0 = arith.constant 0 : i32
    %c0_i32_1 = arith.constant 0 : i32
    return %c0_i32, %c0_i32_0 : i32, i32
  }
  func.func @transform_6(%arg0: i32) -> (i32, i32) {
    %c0_i32 = arith.constant 0 : i32
    %c0_i32_0 = arith.constant 0 : i32
    %c0_i32_1 = arith.constant 0 : i32
    return %c0_i32, %c0_i32_0 : i32, i32
  }
  func.func @transform_7(%arg0: i32) -> (i32, i32) {
    %c0_i32 = arith.constant 0 : i32
    %c0_i32_0 = arith.constant 0 : i32
    return %arg0, %c0_i32 : i32, i32
  }
}

module attributes {stable_mosaic.version = 11 : i64} {
  func.func @_resident_kernel(%arg0: i32, %arg1: memref<16x128xf32, #tpu.memory_space<vmem>>, %arg2: memref<2x128x128xbf16, #tpu.memory_space<vmem>>, %arg3: memref<2x1x128xf32, #tpu.memory_space<vmem>>, %arg4: memref<2x1x128xf32, #tpu.memory_space<vmem>>, %arg5: memref<2x1x128xf32, #tpu.memory_space<vmem>>, %arg6: memref<128x128xbf16, #tpu.memory_space<vmem>>, %arg7: memref<1x128xf32, #tpu.memory_space<vmem>>, %arg8: memref<16x128xf32, #tpu.memory_space<vmem>>) attributes {dimension_semantics = [#tpu.dimension_semantics<parallel>], iteration_bounds = array<i64: 1>, scalar_prefetch = 0 : i64, scratch_operands = 0 : i64, tpu.core_type = #tpu.core_type<tc>, window_params = [{transform_indices = @transform_0, window_bounds = array<i64: 16, 128>}, {pipeline_mode = #tpu.pipeline_mode<synchronous>, transform_indices = @transform_1, window_bounds = array<i64: 2, 128, 128>}, {pipeline_mode = #tpu.pipeline_mode<synchronous>, transform_indices = @transform_2, window_bounds = array<i64: 2, 1, 128>}, {pipeline_mode = #tpu.pipeline_mode<synchronous>, transform_indices = @transform_3, window_bounds = array<i64: 2, 1, 128>}, {pipeline_mode = #tpu.pipeline_mode<synchronous>, transform_indices = @transform_4, window_bounds = array<i64: 2, 1, 128>}, {pipeline_mode = #tpu.pipeline_mode<synchronous>, transform_indices = @transform_5, window_bounds = array<i64: 128, 128>}, {pipeline_mode = #tpu.pipeline_mode<synchronous>, transform_indices = @transform_6, window_bounds = array<i64: 1, 128>}, {transform_indices = @transform_7, window_bounds = array<i64: 16, 128>}]} {
    %c0 = arith.constant 0 : index
    %c0_0 = arith.constant 0 : index
    %0 = vector.load %arg1[%c0, %c0_0] : memref<16x128xf32, #tpu.memory_space<vmem>>, vector<16x128xf32>
    %1 = arith.truncf %0 : vector<16x128xf32> to vector<16x128xbf16>
    %c0_1 = arith.constant 0 : index
    %c0_2 = arith.constant 0 : index
    %c0_3 = arith.constant 0 : index
    %2 = vector.load %arg2[%c0_1, %c0_2, %c0_3] : memref<2x128x128xbf16, #tpu.memory_space<vmem>>, vector<1x128x128xbf16>
    %3 = vector.shape_cast %2 : vector<1x128x128xbf16> to vector<128x128xbf16>
    %cst = arith.constant dense<0.000000e+00> : vector<16x128xf32>
    %4 = tpu.matmul %1, %3, %cst {dimension_numbers = #tpu.dot_dimension_numbers<[1], [0], [0], [1], [0, 0, 1, 1], [], []>} : vector<16x128xbf16>, vector<128x128xbf16>, vector<16x128xf32> -> vector<16x128xf32>
    %c0_4 = arith.constant 0 : index
    %c0_5 = arith.constant 0 : index
    %c0_6 = arith.constant 0 : index
    %5 = vector.load %arg3[%c0_4, %c0_5, %c0_6] : memref<2x1x128xf32, #tpu.memory_space<vmem>>, vector<1x1x128xf32>
    %6 = vector.shape_cast %5 : vector<1x1x128xf32> to vector<1x128xf32>
    %7 = vector.broadcast %6 : vector<1x128xf32> to vector<16x128xf32>
    %8 = arith.addf %4, %7 : vector<16x128xf32>
    %9 = arith.addf %8, %0 : vector<16x128xf32>
    %c0_7 = arith.constant 0 : index
    %c0_8 = arith.constant 0 : index
    %c0_9 = arith.constant 0 : index
    %10 = vector.load %arg4[%c0_7, %c0_8, %c0_9] : memref<2x1x128xf32, #tpu.memory_space<vmem>>, vector<1x1x128xf32>
    %11 = vector.shape_cast %10 : vector<1x1x128xf32> to vector<1x128xf32>
    %c0_10 = arith.constant 0 : index
    %c0_11 = arith.constant 0 : index
    %c0_12 = arith.constant 0 : index
    %12 = vector.load %arg5[%c0_10, %c0_11, %c0_12] : memref<2x1x128xf32, #tpu.memory_space<vmem>>, vector<1x1x128xf32>
    %13 = vector.shape_cast %12 : vector<1x1x128xf32> to vector<1x128xf32>
    %cst_13 = arith.constant dense<0.000000e+00> : vector<16xf32>
    %14 = vector.multi_reduction <add>, %9, %cst_13 [1] : vector<16x128xf32> to vector<16xf32>
    %15 = vector.shape_cast %14 : vector<16xf32> to vector<16x1xf32>
    %cst_14 = arith.constant 1.280000e+02 : f32
    %16 = vector.broadcast %cst_14 : f32 to vector<16x1xf32>
    %17 = arith.divf %15, %16 : vector<16x1xf32>
    %18 = arith.mulf %9, %9 : vector<16x128xf32>
    %cst_15 = arith.constant dense<0.000000e+00> : vector<16xf32>
    %19 = vector.multi_reduction <add>, %18, %cst_15 [1] : vector<16x128xf32> to vector<16xf32>
    %20 = vector.shape_cast %19 : vector<16xf32> to vector<16x1xf32>
    %cst_16 = arith.constant 1.280000e+02 : f32
    %21 = vector.broadcast %cst_16 : f32 to vector<16x1xf32>
    %22 = arith.divf %20, %21 : vector<16x1xf32>
    %23 = arith.mulf %17, %17 : vector<16x1xf32>
    %24 = arith.subf %22, %23 : vector<16x1xf32>
    %cst_17 = arith.constant 9.99999974E-6 : f32
    %25 = vector.broadcast %cst_17 : f32 to vector<16x1xf32>
    %26 = arith.addf %24, %25 : vector<16x1xf32>
    %27 = math.rsqrt %26 : vector<16x1xf32>
    %28 = vector.broadcast %27 : vector<16x1xf32> to vector<16x128xf32>
    %29 = vector.broadcast %11 : vector<1x128xf32> to vector<16x128xf32>
    %30 = arith.mulf %28, %29 : vector<16x128xf32>
    %31 = vector.broadcast %17 : vector<16x1xf32> to vector<16x128xf32>
    %32 = arith.mulf %31, %30 : vector<16x128xf32>
    %33 = vector.broadcast %13 : vector<1x128xf32> to vector<16x128xf32>
    %34 = arith.subf %33, %32 : vector<16x128xf32>
    %35 = arith.mulf %9, %30 : vector<16x128xf32>
    %36 = arith.addf %35, %34 : vector<16x128xf32>
    %cst_18 = arith.constant 0.000000e+00 : f32
    %37 = vector.broadcast %cst_18 : f32 to vector<16x128xf32>
    %38 = arith.maximumf %36, %37 : vector<16x128xf32>
    %39 = arith.truncf %38 : vector<16x128xf32> to vector<16x128xbf16>
    %c1 = arith.constant 1 : index
    %c0_19 = arith.constant 0 : index
    %c0_20 = arith.constant 0 : index
    %40 = vector.load %arg2[%c1, %c0_19, %c0_20] : memref<2x128x128xbf16, #tpu.memory_space<vmem>>, vector<1x128x128xbf16>
    %41 = vector.shape_cast %40 : vector<1x128x128xbf16> to vector<128x128xbf16>
    %cst_21 = arith.constant dense<0.000000e+00> : vector<16x128xf32>
    %42 = tpu.matmul %39, %41, %cst_21 {dimension_numbers = #tpu.dot_dimension_numbers<[1], [0], [0], [1], [0, 0, 1, 1], [], []>} : vector<16x128xbf16>, vector<128x128xbf16>, vector<16x128xf32> -> vector<16x128xf32>
    %c1_22 = arith.constant 1 : index
    %c0_23 = arith.constant 0 : index
    %c0_24 = arith.constant 0 : index
    %43 = vector.load %arg3[%c1_22, %c0_23, %c0_24] : memref<2x1x128xf32, #tpu.memory_space<vmem>>, vector<1x1x128xf32>
    %44 = vector.shape_cast %43 : vector<1x1x128xf32> to vector<1x128xf32>
    %45 = vector.broadcast %44 : vector<1x128xf32> to vector<16x128xf32>
    %46 = arith.addf %42, %45 : vector<16x128xf32>
    %47 = arith.addf %46, %38 : vector<16x128xf32>
    %c1_25 = arith.constant 1 : index
    %c0_26 = arith.constant 0 : index
    %c0_27 = arith.constant 0 : index
    %48 = vector.load %arg4[%c1_25, %c0_26, %c0_27] : memref<2x1x128xf32, #tpu.memory_space<vmem>>, vector<1x1x128xf32>
    %49 = vector.shape_cast %48 : vector<1x1x128xf32> to vector<1x128xf32>
    %c1_28 = arith.constant 1 : index
    %c0_29 = arith.constant 0 : index
    %c0_30 = arith.constant 0 : index
    %50 = vector.load %arg5[%c1_28, %c0_29, %c0_30] : memref<2x1x128xf32, #tpu.memory_space<vmem>>, vector<1x1x128xf32>
    %51 = vector.shape_cast %50 : vector<1x1x128xf32> to vector<1x128xf32>
    %cst_31 = arith.constant dense<0.000000e+00> : vector<16xf32>
    %52 = vector.multi_reduction <add>, %47, %cst_31 [1] : vector<16x128xf32> to vector<16xf32>
    %53 = vector.shape_cast %52 : vector<16xf32> to vector<16x1xf32>
    %cst_32 = arith.constant 1.280000e+02 : f32
    %54 = vector.broadcast %cst_32 : f32 to vector<16x1xf32>
    %55 = arith.divf %53, %54 : vector<16x1xf32>
    %56 = arith.mulf %47, %47 : vector<16x128xf32>
    %cst_33 = arith.constant dense<0.000000e+00> : vector<16xf32>
    %57 = vector.multi_reduction <add>, %56, %cst_33 [1] : vector<16x128xf32> to vector<16xf32>
    %58 = vector.shape_cast %57 : vector<16xf32> to vector<16x1xf32>
    %cst_34 = arith.constant 1.280000e+02 : f32
    %59 = vector.broadcast %cst_34 : f32 to vector<16x1xf32>
    %60 = arith.divf %58, %59 : vector<16x1xf32>
    %61 = arith.mulf %55, %55 : vector<16x1xf32>
    %62 = arith.subf %60, %61 : vector<16x1xf32>
    %cst_35 = arith.constant 9.99999974E-6 : f32
    %63 = vector.broadcast %cst_35 : f32 to vector<16x1xf32>
    %64 = arith.addf %62, %63 : vector<16x1xf32>
    %65 = math.rsqrt %64 : vector<16x1xf32>
    %66 = vector.broadcast %65 : vector<16x1xf32> to vector<16x128xf32>
    %67 = vector.broadcast %49 : vector<1x128xf32> to vector<16x128xf32>
    %68 = arith.mulf %66, %67 : vector<16x128xf32>
    %69 = vector.broadcast %55 : vector<16x1xf32> to vector<16x128xf32>
    %70 = arith.mulf %69, %68 : vector<16x128xf32>
    %71 = vector.broadcast %51 : vector<1x128xf32> to vector<16x128xf32>
    %72 = arith.subf %71, %70 : vector<16x128xf32>
    %73 = arith.mulf %47, %68 : vector<16x128xf32>
    %74 = arith.addf %73, %72 : vector<16x128xf32>
    %cst_36 = arith.constant 0.000000e+00 : f32
    %75 = vector.broadcast %cst_36 : f32 to vector<16x128xf32>
    %76 = arith.maximumf %74, %75 : vector<16x128xf32>
    %77 = arith.truncf %76 : vector<16x128xf32> to vector<16x128xbf16>
    %c0_37 = arith.constant 0 : index
    %c0_38 = arith.constant 0 : index
    %78 = vector.load %arg6[%c0_37, %c0_38] : memref<128x128xbf16, #tpu.memory_space<vmem>>, vector<128x128xbf16>
    %cst_39 = arith.constant dense<0.000000e+00> : vector<16x128xf32>
    %79 = tpu.matmul %77, %78, %cst_39 {dimension_numbers = #tpu.dot_dimension_numbers<[1], [0], [0], [1], [0, 0, 1, 1], [], []>} : vector<16x128xbf16>, vector<128x128xbf16>, vector<16x128xf32> -> vector<16x128xf32>
    %c0_40 = arith.constant 0 : index
    %c0_41 = arith.constant 0 : index
    %80 = vector.load %arg7[%c0_40, %c0_41] : memref<1x128xf32, #tpu.memory_space<vmem>>, vector<1x128xf32>
    %81 = vector.broadcast %80 : vector<1x128xf32> to vector<16x128xf32>
    %82 = arith.addf %79, %81 : vector<16x128xf32>
    %c0_42 = arith.constant 0 : index
    %c0_43 = arith.constant 0 : index
    %83 = vector.load %arg8[%c0_42, %c0_43] : memref<16x128xf32, #tpu.memory_space<vmem>>, vector<16x128xf32>
    tpu.vector_store %arg8[%c0_42, %c0_43], %82 {strides = array<i32>} : memref<16x128xf32, #tpu.memory_space<vmem>>, vector<16x128xf32>,
    return
  }
  func.func @transform_0(%arg0: i32) -> (i32, i32) {
    %c0_i32 = arith.constant 0 : i32
    %c0_i32_0 = arith.constant 0 : i32
    return %arg0, %c0_i32 : i32, i32
  }
  func.func @transform_1(%arg0: i32) -> (i32, i32, i32) {
    %c0_i32 = arith.constant 0 : i32
    %c0_i32_0 = arith.constant 0 : i32
    %c0_i32_1 = arith.constant 0 : i32
    %c0_i32_2 = arith.constant 0 : i32
    return %c0_i32, %c0_i32_0, %c0_i32_1 : i32, i32, i32
  }
  func.func @transform_2(%arg0: i32) -> (i32, i32, i32) {
    %c0_i32 = arith.constant 0 : i32
    %c0_i32_0 = arith.constant 0 : i32
    %c0_i32_1 = arith.constant 0 : i32
    %c0_i32_2 = arith.constant 0 : i32
    return %c0_i32, %c0_i32_0, %c0_i32_1 : i32, i32, i32
  }
  func.func @transform_3(%arg0: i32) -> (i32, i32, i32) {
    %c0_i32 = arith.constant 0 : i32
    %c0_i32_0 = arith.constant 0 : i32
    %c0_i32_1 = arith.constant 0 : i32
    %c0_i32_2 = arith.constant 0 : i32
    return %c0_i32, %c0_i32_0, %c0_i32_1 : i32, i32, i32
  }
  func.func @transform_4(%arg0: i32) -> (i32, i32, i32) {
    %c0_i32 = arith.constant 0 : i32
    %c0_i32_0 = arith.constant 0 : i32
    %c0_i32_1 = arith.constant 0 : i32
    %c0_i32_2 = arith.constant 0 : i32
    return %c0_i32, %c0_i32_0, %c0_i32_1 : i32, i32, i32
  }
  func.func @transform_5(%arg0: i32) -> (i32, i32) {
    %c0_i32 = arith.constant 0 : i32
    %c0_i32_0 = arith.constant 0 : i32
    %c0_i32_1 = arith.constant 0 : i32
    return %c0_i32, %c0_i32_0 : i32, i32
  }
  func.func @transform_6(%arg0: i32) -> (i32, i32) {
    %c0_i32 = arith.constant 0 : i32
    %c0_i32_0 = arith.constant 0 : i32
    %c0_i32_1 = arith.constant 0 : i32
    return %c0_i32, %c0_i32_0 : i32, i32
  }
  func.func @transform_7(%arg0: i32) -> (i32, i32) {
    %c0_i32 = arith.constant 0 : i32
    %c0_i32_0 = arith.constant 0 : i32
    return %arg0, %c0_i32 : i32, i32
  }
}

</mosaic_0001>

<llo_original>
// kernel: tpu_custom_call.1
$region0: #{tpu_custom_call.1}
  #allocation0 [shape = 'u32[]', space=smem, size = 0x4, offset = 0x4, fixed_abs, tag = 'smem constant byte address 0x4 - core index']
  #allocation1 [shape = 'u32[72,128]{1,0:T(1,128)}', space=vmem, size = 0x9000, scoped, tag = 'internal scratch']
  %s0 = inlined_call_operand.hbm [shape: f32[16,128], index: 0, kind: input, shape index: {}]
  %s1 = inlined_call_operand.hbm [shape: bf16[2,128,128], index: 1, kind: input, shape index: {}]
  %s2 = inlined_call_operand.hbm [shape: f32[2,1,128], index: 2, kind: input, shape index: {}]
  %s3 = inlined_call_operand.vmem [shape: f32[2,1,128], index: 3, kind: input, shape index: {}]
  %s4 = inlined_call_operand.hbm [shape: f32[2,1,128], index: 4, kind: input, shape index: {}]
  %s5 = inlined_call_operand.hbm [shape: bf16[128,128], index: 5, kind: input, shape index: {}]
  %s6 = inlined_call_operand.vmem [shape: f32[1,128], index: 6, kind: input, shape index: {}]
  %s7 = inlined_call_operand.hbm [shape: f32[16,128], index: 7, kind: output, shape index: {}]
  %s8 = sld [smem:[#allocation0]]
  $region58: #{tpu_custom_call.1} parent=0
    _
  %s10 = ssub.s32 1, %s8
  %s11 = scalar_select 0, %s10, %s8
  $region1: #{tpu_custom_call.1} parent=0
    #allocation2 [shape = 'u8[8192]{0}', space=vmem, size = 0x2000, scoped, tag = 'input window, operand 0, single buffered']
    #allocation3 [shape = 's32[1]{0}', space=sflag, size = 0x4, scoped, tag = 'scoped memory for tpu_custom_call.1']
    #allocation4 [shape = 's32[1]{0}', space=sflag, size = 0x4, scoped, tag = 'scoped memory for tpu_custom_call.1']
    #allocation5 [shape = 'u8[65536]{0}', space=vmem, size = 0x10000, scoped, tag = 'input window, operand 1, single buffered']
    #allocation6 [shape = 's32[1]{0}', space=sflag, size = 0x4, scoped, tag = 'scoped memory for tpu_custom_call.1']
    #allocation7 [shape = 'u8[1024]{0}', space=vmem, size = 0x400, scoped, tag = 'input window, operand 2, single buffered']
    #allocation8 [shape = 'u8[1024]{0}', space=vmem, size = 0x400, scoped, tag = 'input window, operand 4, single buffered']
    #allocation9 [shape = 's32[1]{0}', space=sflag, size = 0x4, scoped, tag = 'scoped memory for tpu_custom_call.1']
    #allocation10 [shape = 'u8[32768]{0}', space=vmem, size = 0x8000, scoped, tag = 'input window, operand 5, single buffered']
    #allocation11 [shape = 'u8[8192]{0}', space=vmem, size = 0x2000, scoped, tag = 'output window, operand 0, single buffered']
    %12 = vsyncpa [#allocation3], 0
    %13 = vsyncpa [#allocation6], 0
    %14 = vsyncpa [#allocation9], 0
    %15 = vsyncpa [#allocation4], 0
    // Predicated region
    $region2: #{tpu_custom_call.1} parent=1 // pred_check
      _
    $region3: #{tpu_custom_call.1} parent=1 // pred_check_branch
      %17 = sbr.rel (0) target = $region5
    $region4: #{tpu_custom_call.1} parent=1 // pred_region
      %19 = vsyncadd [#allocation3], 0
      %s20 = sshll.u32 %s0, 4
      %s21 = int_to_ptr.hbm [resolvable:$true] %s20
      %s22 = sshll.u32 [#allocation2], 4
      %s23 = int_to_ptr.vmem [resolvable:$true] %s22
      %28 = dma.hbm_to_vmem [thread:$0]  %s21, 256, %s23, [#allocation3], 128, 128, 8
    $region5: #{tpu_custom_call.1} parent=1 // pred_fallthru
      _
    // Predicated region
    $region6: #{tpu_custom_call.1} parent=1 // pred_check
      _
    $region7: #{tpu_custom_call.1} parent=1 // pred_check_branch
      %30 = sbr.rel (0) target = $region9
    $region8: #{tpu_custom_call.1} parent=1 // pred_region
      %32 = vsyncadd [#allocation6], 0
      %s33 = sshll.u32 %s1, 4
      %s34 = int_to_ptr.hbm [resolvable:$true] %s33
      %s35 = sshll.u32 [#allocation5], 4
      %s36 = int_to_ptr.vmem [resolvable:$true] %s35
      %41 = dma.hbm_to_vmem [thread:$0]  %s34, 2048, %s36, [#allocation6], 64, 64, 4
    $region9: #{tpu_custom_call.1} parent=1 // pred_fallthru
      _
    // Predicated region
    $region10: #{tpu_custom_call.1} parent=1 // pred_check
      _
    $region11: #{tpu_custom_call.1} parent=1 // pred_check_branch
      %43 = sbr.rel (0) target = $region13
    $region12: #{tpu_custom_call.1} parent=1 // pred_region
      %45 = vsyncadd [#allocation6], 0
      %s46 = sshll.u32 %s2, 4
      %s47 = int_to_ptr.hbm [resolvable:$true] %s46
      %s48 = sshll.u32 [#allocation7], 4
      %s49 = int_to_ptr.vmem [resolvable:$true] %s48
      %54 = dma.hbm_to_vmem [thread:$0]  %s47, 32, %s49, [#allocation6], 16, 16, 1
    $region13: #{tpu_custom_call.1} parent=1 // pred_fallthru
      _
    // Predicated region
    $region14: #{tpu_custom_call.1} parent=1 // pred_check
      _
    $region15: #{tpu_custom_call.1} parent=1 // pred_check_branch
      %56 = sbr.rel (0) target = $region17
    $region16: #{tpu_custom_call.1} parent=1 // pred_region
      _
    $region17: #{tpu_custom_call.1} parent=1 // pred_fallthru
      _
    // Predicated region
    $region18: #{tpu_custom_call.1} parent=1 // pred_check
      _
    $region19: #{tpu_custom_call.1} parent=1 // pred_check_branch
      %58 = sbr.rel (0) target = $region21
    $region20: #{tpu_custom_call.1} parent=1 // pred_region
      %60 = vsyncadd [#allocation9], 0
      %s61 = sshll.u32 %s4, 4
      %s62 = int_to_ptr.hbm [resolvable:$true] %s61
      %s63 = sshll.u32 [#allocation8], 4
      %s64 = int_to_ptr.vmem [resolvable:$true] %s63
      %69 = dma.hbm_to_vmem [thread:$0]  %s62, 32, %s64, [#allocation9], 16, 16, 1
    $region21: #{tpu_custom_call.1} parent=1 // pred_fallthru
      _
    // Predicated region
    $region22: #{tpu_custom_call.1} parent=1 // pred_check
      _
    $region23: #{tpu_custom_call.1} parent=1 // pred_check_branch
      %71 = sbr.rel (0) target = $region25
    $region24: #{tpu_custom_call.1} parent=1 // pred_region
      %73 = vsyncadd [#allocation9], 0
      %s74 = sshll.u32 %s5, 4
      %s75 = int_to_ptr.hbm [resolvable:$true] %s74
      %s76 = sshll.u32 [#allocation10], 4
      %s77 = int_to_ptr.vmem [resolvable:$true] %s76
      %82 = dma.hbm_to_vmem [thread:$0]  %s75, 1024, %s77, [#allocation9], 64, 64, 4
    $region25: #{tpu_custom_call.1} parent=1 // pred_fallthru
      _
    // Predicated region
    $region26: #{tpu_custom_call.1} parent=1 // pred_check
      _
    $region27: #{tpu_custom_call.1} parent=1 // pred_check_branch
      %84 = sbr.rel (0) target = $region29
    $region28: #{tpu_custom_call.1} parent=1 // pred_region
      _
    $region29: #{tpu_custom_call.1} parent=1 // pred_fallthru
      _
    // Predicated region
    $region30: #{tpu_custom_call.1} parent=1 // pred_check
      _
    $region31: #{tpu_custom_call.1} parent=1 // pred_check_branch
      %86 = sbr.rel (0) target = $region33
    $region32: #{tpu_custom_call.1} parent=1 // pred_region
      %88 = dma.done [#allocation3], 256
    $region33: #{tpu_custom_call.1} parent=1 // pred_fallthru
      _
    // Predicated region
    $region34: #{tpu_custom_call.1} parent=1 // pred_check
      _
    $region35: #{tpu_custom_call.1} parent=1 // pred_check_branch
      %90 = sbr.rel (0) target = $region37
    $region36: #{tpu_custom_call.1} parent=1 // pred_region
      %92 = dma.done [#allocation6], 2048
    $region37: #{tpu_custom_call.1} parent=1 // pred_fallthru
      _
    // Predicated region
    $region38: #{tpu_custom_call.1} parent=1 // pred_check
      _
    $region39: #{tpu_custom_call.1} parent=1 // pred_check_branch
      %94 = sbr.rel (0) target = $region41
    $region40: #{tpu_custom_call.1} parent=1 // pred_region
      %96 = dma.done [#allocation6], 32
    $region41: #{tpu_custom_call.1} parent=1 // pred_fallthru
      _
    // Predicated region
    $region42: #{tpu_custom_call.1} parent=1 // pred_check
      _
    $region43: #{tpu_custom_call.1} parent=1 // pred_check_branch
      %98 = sbr.rel (0) target = $region45
    $region44: #{tpu_custom_call.1} parent=1 // pred_region
      %100 = dma.done [#allocation9], 32
    $region45: #{tpu_custom_call.1} parent=1 // pred_fallthru
      _
    // Predicated region
    $region46: #{tpu_custom_call.1} parent=1 // pred_check
      _
    $region47: #{tpu_custom_call.1} parent=1 // pred_check_branch
      %102 = sbr.rel (0) target = $region49
    $region48: #{tpu_custom_call.1} parent=1 // pred_region
      %104 = dma.done [#allocation9], 1024
    $region49: #{tpu_custom_call.1} parent=1 // pred_fallthru
      _
    %v105 = vld [vmem:[#allocation2] sm:$0xff]
    %v106 = vld [vmem:[#allocation2 + $0x8] sm:$0xff]
    %v107 = vpack.c.bf16 %v106, %v105
    %v108 = vld [vmem:[#allocation5] sm:$0xf]
    %v109 = vld [vmem:[#allocation5 + $0x4] sm:$0xf]
    %v110 = vld [vmem:[#allocation5 + $0x8] sm:$0xf]
    %v111 = vld [vmem:[#allocation5 + $0xc] sm:$0xf]
    %v112 = vld [vmem:[#allocation5 + $0x10] sm:$0xf]
    %v113 = vld [vmem:[#allocation5 + $0x14] sm:$0xf]
    %v114 = vld [vmem:[#allocation5 + $0x18] sm:$0xf]
    %v115 = vld [vmem:[#allocation5 + $0x1c] sm:$0xf]
    %v116 = vld [vmem:[#allocation5 + $0x20] sm:$0xf]
    %v117 = vld [vmem:[#allocation5 + $0x24] sm:$0xf]
    %v118 = vld [vmem:[#allocation5 + $0x28] sm:$0xf]
    %v119 = vld [vmem:[#allocation5 + $0x2c] sm:$0xf]
    %v120 = vld [vmem:[#allocation5 + $0x30] sm:$0xf]
    %v121 = vld [vmem:[#allocation5 + $0x34] sm:$0xf]
    %v122 = vld [vmem:[#allocation5 + $0x38] sm:$0xf]
    %v123 = vld [vmem:[#allocation5 + $0x3c] sm:$0xf]
    %v124 = vld [vmem:[#allocation7] sm:$0x1]
    %v126 = vperm.slane %v124, 0
    %v144 = vunpack.c.l.b16 %v108
    %v145 = vunpack.c.l.b16 %v109
    %v146 = vunpack.c.l.b16 %v110
    %v147 = vunpack.c.l.b16 %v111
    %v148 = vunpack.c.l.b16 %v112
    %v149 = vunpack.c.l.b16 %v113
    %v150 = vunpack.c.l.b16 %v114
    %v151 = vunpack.c.l.b16 %v115
    %v152 = vunpack.c.l.b16 %v116
    %v153 = vunpack.c.l.b16 %v117
    %v154 = vunpack.c.l.b16 %v118
    %v155 = vunpack.c.l.b16 %v119
    %v156 = vunpack.c.l.b16 %v120
    %v157 = vunpack.c.l.b16 %v121
    %v158 = vunpack.c.l.b16 %v122
    %v159 = vunpack.c.l.b16 %v123
    %v160 = vpack.c.b16 %v145, %v144
    %v161 = vpack.c.b16 %v147, %v146
    %v162 = vpack.c.b16 %v149, %v148
    %v163 = vpack.c.b16 %v151, %v150
    %v164 = vpack.c.b16 %v153, %v152
    %v165 = vpack.c.b16 %v155, %v154
    %v166 = vpack.c.b16 %v157, %v156
    %v167 = vpack.c.b16 %v159, %v158
    %176 = vmatpush.bf16.msra.mxu0 %v167
    %177 = vmatpush.bf16.msra.mxu0 %v166
    %178 = vmatpush.bf16.msra.mxu0 %v165
    %179 = vmatpush.bf16.msra.mxu0 %v164
    %180 = vmatpush.bf16.msra.mxu0 %v163
    %181 = vmatpush.bf16.msra.mxu0 %v162
    %182 = vmatpush.bf16.msra.mxu0 %v161
    %183 = vmatpush.bf16.msra.mxu0 %v160
    %184 = vmatmul.bf16.gmra.mxu0 %v107
    %v185 = vpop.f32.mrf.mxu0
    %v186 = vadd.f32 %v126, %v185
    %v187 = vpop.f32.mrf.mxu0
    %v188 = vadd.f32 %v126, %v187
    %189 = vdwg.mxu0
    %v190 = vadd.f32 %v186, %v105
    %v191 = vadd.f32 %v188, %v106
    %v192 = vld [vmem:[%s3] sm:$0x1]
    %v193 = vld [vmem:[#allocation8] sm:$0x1]
    %194 = vadd.xlane.f32.xlu0 %v190
    %v195 = vpop.xlane.xlu0 %194
    %196 = vadd.xlane.f32.xlu0 %v191
    %v197 = vpop.xlane.xlu0 %196
    %v198 = vrcp.pop 128.0
    %v199 = vmul.f32 128.0, %v198
    %v200 = vsub.f32 1.0, %v199
    %v201 = vmul.f32 %v198, %v200
    %v202 = vadd.f32 %v198, %v201
    %vm203 = vweird.f32 %v198
    %v204 = vsel %vm203, %v198, %v202
    %v205 = vmul.f32 %v195, %v204
    %v206 = vmul.f32 %v197, %v204
    %v207 = vmul.f32 %v190, %v190
    %v208 = vmul.f32 %v191, %v191
    %209 = vadd.xlane.f32.xlu0 %v207
    %v210 = vpop.xlane.xlu0 %209
    %211 = vadd.xlane.f32.xlu0 %v208
    %v212 = vpop.xlane.xlu0 %211
    %v213 = vmul.f32 %v210, %v204
    %v214 = vmul.f32 %v212, %v204
    %v215 = vmul.f32 %v205, %v205
    %v216 = vmul.f32 %v206, %v206
    %v217 = vsub.f32 %v213, %v215
    %v218 = vsub.f32 %v214, %v216
    %v219 = vadd.f32 %v217, 1e-05
    %v220 = vadd.f32 %v218, 1e-05
    %v221 = vrsqrt.pop %v219
    %v222 = vmul.f32 %v221, %v219
    %v223 = vmul.f32 %v222, %v221
    %v224 = vmul.f32 0.5, %v223
    %v225 = vsub.f32 1.5, %v224
    %v226 = vmul.f32 %v221, %v225
    %vm227 = vweird.f32 %v219
    %vm228 = vweird.f32 %v221
    %vm229 = vmor %vm227, %vm228
    %v230 = vsel %vm229, %v221, %v226
    %v231 = vrsqrt.pop %v220
    %v232 = vmul.f32 %v231, %v220
    %v233 = vmul.f32 %v232, %v231
    %v234 = vmul.f32 0.5, %v233
    %v235 = vsub.f32 1.5, %v234
    %v236 = vmul.f32 %v231, %v235
    %vm237 = vweird.f32 %v220
    %vm238 = vweird.f32 %v231
    %vm239 = vmor %vm237, %vm238
    %v240 = vsel %vm239, %v231, %v236
    %v242 = vperm.slane %v192, 0
    %v244 = vmul.f32 %v230, %v242
    %v245 = vmul.f32 %v240, %v242
    %v246 = vmul.f32 %v205, %v244
    %v247 = vmul.f32 %v206, %v245
    %v249 = vperm.slane %v193, 0
    %v251 = vsub.f32 %v249, %v246
    %v252 = vsub.f32 %v249, %v247
    %v253 = vmul.f32 %v190, %v244
    %v254 = vmul.f32 %v191, %v245
    %v255 = vadd.f32 %v253, %v251
    %v256 = vadd.f32 %v254, %v252
    %v257 = vmax.f32 %v255, 0.0
    %v258 = vmax.f32 %v256, 0.0
    %v259 = vpack.c.bf16 %v258, %v257
    %s260 = scalar_lea.vmem [#allocation5], 64
    %v261 = vld [vmem:[%s260] sm:$0xf]
    %v262 = vld [vmem:[%s260 + $0x4] sm:$0xf]
    %v263 = vld [vmem:[%s260 + $0x8] sm:$0xf]
    %v264 = vld [vmem:[%s260 + $0xc] sm:$0xf]
    %v265 = vld [vmem:[%s260 + $0x10] sm:$0xf]
    %v266 = vld [vmem:[%s260 + $0x14] sm:$0xf]
    %v267 = vld [vmem:[%s260 + $0x18] sm:$0xf]
    %v268 = vld [vmem:[%s260 + $0x1c] sm:$0xf]
    %v269 = vld [vmem:[%s260 + $0x20] sm:$0xf]
    %v270 = vld [vmem:[%s260 + $0x24] sm:$0xf]
    %v271 = vld [vmem:[%s260 + $0x28] sm:$0xf]
    %v272 = vld [vmem:[%s260 + $0x2c] sm:$0xf]
    %v273 = vld [vmem:[%s260 + $0x30] sm:$0xf]
    %v274 = vld [vmem:[%s260 + $0x34] sm:$0xf]
    %v275 = vld [vmem:[%s260 + $0x38] sm:$0xf]
    %v276 = vld [vmem:[%s260 + $0x3c] sm:$0xf]
    %s277 = scalar_lea.vmem [#allocation7], 1
    %v278 = vld [vmem:[%s277] sm:$0x1]
    %v280 = vperm.slane %v278, 0
    %v298 = vunpack.c.l.b16 %v261
    %v299 = vunpack.c.l.b16 %v262
    %v300 = vunpack.c.l.b16 %v263
    %v301 = vunpack.c.l.b16 %v264
    %v302 = vunpack.c.l.b16 %v265
    %v303 = vunpack.c.l.b16 %v266
    %v304 = vunpack.c.l.b16 %v267
    %v305 = vunpack.c.l.b16 %v268
    %v306 = vunpack.c.l.b16 %v269
    %v307 = vunpack.c.l.b16 %v270
    %v308 = vunpack.c.l.b16 %v271
    %v309 = vunpack.c.l.b16 %v272
    %v310 = vunpack.c.l.b16 %v273
    %v311 = vunpack.c.l.b16 %v274
    %v312 = vunpack.c.l.b16 %v275
    %v313 = vunpack.c.l.b16 %v276
    %v314 = vpack.c.b16 %v299, %v298
    %v315 = vpack.c.b16 %v301, %v300
    %v316 = vpack.c.b16 %v303, %v302
    %v317 = vpack.c.b16 %v305, %v304
    %v318 = vpack.c.b16 %v307, %v306
    %v319 = vpack.c.b16 %v309, %v308
    %v320 = vpack.c.b16 %v311, %v310
    %v321 = vpack.c.b16 %v313, %v312
    %330 = vmatpush.bf16.msra.mxu0 %v321
    %331 = vmatpush.bf16.msra.mxu0 %v320
    %332 = vmatpush.bf16.msra.mxu0 %v319
    %333 = vmatpush.bf16.msra.mxu0 %v318
    %334 = vmatpush.bf16.msra.mxu0 %v317
    %335 = vmatpush.bf16.msra.mxu0 %v316
    %336 = vmatpush.bf16.msra.mxu0 %v315
    %337 = vmatpush.bf16.msra.mxu0 %v314
    %338 = vmatmul.bf16.gmra.mxu0 %v259
    %v339 = vpop.f32.mrf.mxu0
    %v340 = vadd.f32 %v280, %v339
    %v341 = vpop.f32.mrf.mxu0
    %v342 = vadd.f32 %v280, %v341
    %343 = vdwg.mxu0
    %v344 = vadd.f32 %v340, %v257
    %v345 = vadd.f32 %v342, %v258
    %s346 = scalar_lea.vmem %s3, 1
    %v347 = vld [vmem:[%s346] sm:$0x1]
    %s348 = scalar_lea.vmem [#allocation8], 1
    %v349 = vld [vmem:[%s348] sm:$0x1]
    %350 = vadd.xlane.f32.xlu0 %v344
    %v351 = vpop.xlane.xlu0 %350
    %352 = vadd.xlane.f32.xlu0 %v345
    %v353 = vpop.xlane.xlu0 %352
    %v354 = vmul.f32 %v351, %v204
    %v355 = vmul.f32 %v353, %v204
    %v356 = vmul.f32 %v344, %v344
    %v357 = vmul.f32 %v345, %v345
    %358 = vadd.xlane.f32.xlu0 %v356
    %v359 = vpop.xlane.xlu0 %358
    %360 = vadd.xlane.f32.xlu0 %v357
    %v361 = vpop.xlane.xlu0 %360
    %v362 = vmul.f32 %v359, %v204
    %v363 = vmul.f32 %v361, %v204
    %v364 = vmul.f32 %v354, %v354
    %v365 = vmul.f32 %v355, %v355
    %v366 = vsub.f32 %v362, %v364
    %v367 = vsub.f32 %v363, %v365
    %v368 = vadd.f32 %v366, 1e-05
    %v369 = vadd.f32 %v367, 1e-05
    %v370 = vrsqrt.pop %v368
    %v371 = vmul.f32 %v370, %v368
    %v372 = vmul.f32 %v371, %v370
    %v373 = vmul.f32 0.5, %v372
    %v374 = vsub.f32 1.5, %v373
    %v375 = vmul.f32 %v370, %v374
    %vm376 = vweird.f32 %v368
    %vm377 = vweird.f32 %v370
    %vm378 = vmor %vm376, %vm377
    %v379 = vsel %vm378, %v370, %v375
    %v380 = vrsqrt.pop %v369
    %v381 = vmul.f32 %v380, %v369
    %v382 = vmul.f32 %v381, %v380
    %v383 = vmul.f32 0.5, %v382
    %v384 = vsub.f32 1.5, %v383
    %v385 = vmul.f32 %v380, %v384
    %vm386 = vweird.f32 %v369
    %vm387 = vweird.f32 %v380
    %vm388 = vmor %vm386, %vm387
    %v389 = vsel %vm388, %v380, %v385
    %v391 = vperm.slane %v347, 0
    %v393 = vmul.f32 %v379, %v391
    %v394 = vmul.f32 %v389, %v391
    %v395 = vmul.f32 %v354, %v393
    %v396 = vmul.f32 %v355, %v394
    %v398 = vperm.slane %v349, 0
    %v400 = vsub.f32 %v398, %v395
    %v401 = vsub.f32 %v398, %v396
    %v402 = vmul.f32 %v344, %v393
    %v403 = vmul.f32 %v345, %v394
    %v404 = vadd.f32 %v402, %v400
    %v405 = vadd.f32 %v403, %v401
    %v406 = vmax.f32 %v404, 0.0
    %v407 = vmax.f32 %v405, 0.0
    %v408 = vpack.c.bf16 %v407, %v406
    %v409 = vld [vmem:[#allocation10] sm:$0xf]
    %v410 = vld [vmem:[#allocation10 + $0x4] sm:$0xf]
    %v411 = vld [vmem:[#allocation10 + $0x8] sm:$0xf]
    %v412 = vld [vmem:[#allocation10 + $0xc] sm:$0xf]
    %v413 = vld [vmem:[#allocation10 + $0x10] sm:$0xf]
    %v414 = vld [vmem:[#allocation10 + $0x14] sm:$0xf]
    %v415 = vld [vmem:[#allocation10 + $0x18] sm:$0xf]
    %v416 = vld [vmem:[#allocation10 + $0x1c] sm:$0xf]
    %v417 = vld [vmem:[#allocation10 + $0x20] sm:$0xf]
    %v418 = vld [vmem:[#allocation10 + $0x24] sm:$0xf]
    %v419 = vld [vmem:[#allocation10 + $0x28] sm:$0xf]
    %v420 = vld [vmem:[#allocation10 + $0x2c] sm:$0xf]
    %v421 = vld [vmem:[#allocation10 + $0x30] sm:$0xf]
    %v422 = vld [vmem:[#allocation10 + $0x34] sm:$0xf]
    %v423 = vld [vmem:[#allocation10 + $0x38] sm:$0xf]
    %v424 = vld [vmem:[#allocation10 + $0x3c] sm:$0xf]
    %v425 = vld [vmem:[%s6] sm:$0x1]
    %v427 = vperm.slane %v425, 0
    %v445 = vunpack.c.l.b16 %v409
    %v446 = vunpack.c.l.b16 %v410
    %v447 = vunpack.c.l.b16 %v411
    %v448 = vunpack.c.l.b16 %v412
    %v449 = vunpack.c.l.b16 %v413
    %v450 = vunpack.c.l.b16 %v414
    %v451 = vunpack.c.l.b16 %v415
    %v452 = vunpack.c.l.b16 %v416
    %v453 = vunpack.c.l.b16 %v417
    %v454 = vunpack.c.l.b16 %v418
    %v455 = vunpack.c.l.b16 %v419
    %v456 = vunpack.c.l.b16 %v420
    %v457 = vunpack.c.l.b16 %v421
    %v458 = vunpack.c.l.b16 %v422
    %v459 = vunpack.c.l.b16 %v423
    %v460 = vunpack.c.l.b16 %v424
    %v461 = vpack.c.b16 %v446, %v445
    %v462 = vpack.c.b16 %v448, %v447
    %v463 = vpack.c.b16 %v450, %v449
    %v464 = vpack.c.b16 %v452, %v451
    %v465 = vpack.c.b16 %v454, %v453
    %v466 = vpack.c.b16 %v456, %v455
    %v467 = vpack.c.b16 %v458, %v457
    %v468 = vpack.c.b16 %v460, %v459
    %477 = vmatpush.bf16.msra.mxu0 %v468
    %478 = vmatpush.bf16.msra.mxu0 %v467
    %479 = vmatpush.bf16.msra.mxu0 %v466
    %480 = vmatpush.bf16.msra.mxu0 %v465
    %481 = vmatpush.bf16.msra.mxu0 %v464
    %482 = vmatpush.bf16.msra.mxu0 %v463
    %483 = vmatpush.bf16.msra.mxu0 %v462
    %484 = vmatpush.bf16.msra.mxu0 %v461
    %485 = vmatmul.bf16.gmra.mxu0 %v408
    %v486 = vpop.f32.mrf.mxu0
    %v487 = vadd.f32 %v427, %v486
    %v488 = vpop.f32.mrf.mxu0
    %v489 = vadd.f32 %v427, %v488
    %490 = vdwg.mxu0
    %491 = vst [vmem:[#allocation11] sm:$0xff] %v487
    %492 = vst [vmem:[#allocation11 + $0x8] sm:$0xff] %v489
    // Predicated region
    $region50: #{tpu_custom_call.1} parent=1 // pred_check
      _
    $region51: #{tpu_custom_call.1} parent=1 // pred_check_branch
      %494 = sbr.rel (0) target = $region53
    $region52: #{tpu_custom_call.1} parent=1 // pred_region
      %496 = vsyncadd [#allocation4], 0
      %s497 = sshll.u32 [#allocation11], 4
      %s498 = int_to_ptr.vmem [resolvable:$true] %s497
      %s499 = sshll.u32 %s7, 4
      %s500 = int_to_ptr.hbm [resolvable:$true] %s499
      %505 = dma.vmem_to_hbm [thread:$0]  %s498, 256, %s500, [#allocation4], 128, 128, 8
    $region53: #{tpu_custom_call.1} parent=1 // pred_fallthru
      _
    // Predicated region
    $region54: #{tpu_custom_call.1} parent=1 // pred_check
      _
    $region55: #{tpu_custom_call.1} parent=1 // pred_check_branch
      %507 = sbr.rel (0) target = $region57
    $region56: #{tpu_custom_call.1} parent=1 // pred_region
      %509 = dma.done [#allocation4], 256
    $region57: #{tpu_custom_call.1} parent=1 // pred_fallthru
      _
    %510 = vsyncpa [#allocation3], 1
    %511 = vsyncpa [#allocation6], 1
    %512 = vsyncpa [#allocation9], 1
    %513 = vsyncpa [#allocation4], 1

// kernel: tpu_custom_call.1
$region0: #{tpu_custom_call.1}
  #allocation0 [shape = 'u32[]', space=smem, size = 0x4, offset = 0x4, fixed_abs, tag = 'smem constant byte address 0x4 - core index']
  #allocation1 [shape = 'u32[72,128]{1,0:T(1,128)}', space=vmem, size = 0x9000, scoped, tag = 'internal scratch']
  %s0 = inlined_call_operand.hbm [shape: f32[16,128], index: 0, kind: input, shape index: {}]
  %s1 = inlined_call_operand.hbm [shape: bf16[2,128,128], index: 1, kind: input, shape index: {}]
  %s2 = inlined_call_operand.hbm [shape: f32[2,1,128], index: 2, kind: input, shape index: {}]
  %s3 = inlined_call_operand.vmem [shape: f32[2,1,128], index: 3, kind: input, shape index: {}]
  %s4 = inlined_call_operand.hbm [shape: f32[2,1,128], index: 4, kind: input, shape index: {}]
  %s5 = inlined_call_operand.hbm [shape: bf16[128,128], index: 5, kind: input, shape index: {}]
  %s6 = inlined_call_operand.vmem [shape: f32[1,128], index: 6, kind: input, shape index: {}]
  %s7 = inlined_call_operand.hbm [shape: f32[16,128], index: 7, kind: output, shape index: {}]
  %s8 = sld [smem:[#allocation0]]
  $region58: #{tpu_custom_call.1} parent=0
    _
  %s10 = ssub.s32 1, %s8
  %s11 = scalar_select 0, %s10, %s8
  $region1: #{tpu_custom_call.1} parent=0
    #allocation2 [shape = 'u8[8192]{0}', space=vmem, size = 0x2000, scoped, tag = 'input window, operand 0, single buffered']
    #allocation3 [shape = 's32[1]{0}', space=sflag, size = 0x4, scoped, tag = 'scoped memory for tpu_custom_call.1']
    #allocation4 [shape = 's32[1]{0}', space=sflag, size = 0x4, scoped, tag = 'scoped memory for tpu_custom_call.1']
    #allocation5 [shape = 'u8[65536]{0}', space=vmem, size = 0x10000, scoped, tag = 'input window, operand 1, single buffered']
    #allocation6 [shape = 's32[1]{0}', space=sflag, size = 0x4, scoped, tag = 'scoped memory for tpu_custom_call.1']
    #allocation7 [shape = 'u8[1024]{0}', space=vmem, size = 0x400, scoped, tag = 'input window, operand 2, single buffered']
    #allocation8 [shape = 'u8[1024]{0}', space=vmem, size = 0x400, scoped, tag = 'input window, operand 4, single buffered']
    #allocation9 [shape = 's32[1]{0}', space=sflag, size = 0x4, scoped, tag = 'scoped memory for tpu_custom_call.1']
    #allocation10 [shape = 'u8[32768]{0}', space=vmem, size = 0x8000, scoped, tag = 'input window, operand 5, single buffered']
    #allocation11 [shape = 'u8[8192]{0}', space=vmem, size = 0x2000, scoped, tag = 'output window, operand 0, single buffered']
    %12 = vsyncpa [#allocation3], 0
    %13 = vsyncpa [#allocation6], 0
    %14 = vsyncpa [#allocation9], 0
    %15 = vsyncpa [#allocation4], 0
    // Predicated region
    $region2: #{tpu_custom_call.1} parent=1 // pred_check
      _
    $region3: #{tpu_custom_call.1} parent=1 // pred_check_branch
      %17 = sbr.rel (0) target = $region5
    $region4: #{tpu_custom_call.1} parent=1 // pred_region
      %19 = vsyncadd [#allocation3], 0
      %s20 = sshll.u32 %s0, 4
      %s21 = int_to_ptr.hbm [resolvable:$true] %s20
      %s22 = sshll.u32 [#allocation2], 4
      %s23 = int_to_ptr.vmem [resolvable:$true] %s22
      %28 = dma.hbm_to_vmem [thread:$0]  %s21, 256, %s23, [#allocation3], 128, 128, 8
    $region5: #{tpu_custom_call.1} parent=1 // pred_fallthru
      _
    // Predicated region
    $region6: #{tpu_custom_call.1} parent=1 // pred_check
      _
    $region7: #{tpu_custom_call.1} parent=1 // pred_check_branch
      %30 = sbr.rel (0) target = $region9
    $region8: #{tpu_custom_call.1} parent=1 // pred_region
      %32 = vsyncadd [#allocation6], 0
      %s33 = sshll.u32 %s1, 4
      %s34 = int_to_ptr.hbm [resolvable:$true] %s33
      %s35 = sshll.u32 [#allocation5], 4
      %s36 = int_to_ptr.vmem [resolvable:$true] %s35
      %41 = dma.hbm_to_vmem [thread:$0]  %s34, 2048, %s36, [#allocation6], 64, 64, 4
    $region9: #{tpu_custom_call.1} parent=1 // pred_fallthru
      _
    // Predicated region
    $region10: #{tpu_custom_call.1} parent=1 // pred_check
      _
    $region11: #{tpu_custom_call.1} parent=1 // pred_check_branch
      %43 = sbr.rel (0) target = $region13
    $region12: #{tpu_custom_call.1} parent=1 // pred_region
      %45 = vsyncadd [#allocation6], 0
      %s46 = sshll.u32 %s2, 4
      %s47 = int_to_ptr.hbm [resolvable:$true] %s46
      %s48 = sshll.u32 [#allocation7], 4
      %s49 = int_to_ptr.vmem [resolvable:$true] %s48
      %54 = dma.hbm_to_vmem [thread:$0]  %s47, 32, %s49, [#allocation6], 16, 16, 1
    $region13: #{tpu_custom_call.1} parent=1 // pred_fallthru
      _
    // Predicated region
    $region14: #{tpu_custom_call.1} parent=1 // pred_check
      _
    $region15: #{tpu_custom_call.1} parent=1 // pred_check_branch
      %56 = sbr.rel (0) target = $region17
    $region16: #{tpu_custom_call.1} parent=1 // pred_region
      _
    $region17: #{tpu_custom_call.1} parent=1 // pred_fallthru
      _
    // Predicated region
    $region18: #{tpu_custom_call.1} parent=1 // pred_check
      _
    $region19: #{tpu_custom_call.1} parent=1 // pred_check_branch
      %58 = sbr.rel (0) target = $region21
    $region20: #{tpu_custom_call.1} parent=1 // pred_region
      %60 = vsyncadd [#allocation9], 0
      %s61 = sshll.u32 %s4, 4
      %s62 = int_to_ptr.hbm [resolvable:$true] %s61
      %s63 = sshll.u32 [#allocation8], 4
      %s64 = int_to_ptr.vmem [resolvable:$true] %s63
      %69 = dma.hbm_to_vmem [thread:$0]  %s62, 32, %s64, [#allocation9], 16, 16, 1
    $region21: #{tpu_custom_call.1} parent=1 // pred_fallthru
      _
    // Predicated region
    $region22: #{tpu_custom_call.1} parent=1 // pred_check
      _
    $region23: #{tpu_custom_call.1} parent=1 // pred_check_branch
      %71 = sbr.rel (0) target = $region25
    $region24: #{tpu_custom_call.1} parent=1 // pred_region
      %73 = vsyncadd [#allocation9], 0
      %s74 = sshll.u32 %s5, 4
      %s75 = int_to_ptr.hbm [resolvable:$true] %s74
      %s76 = sshll.u32 [#allocation10], 4
      %s77 = int_to_ptr.vmem [resolvable:$true] %s76
      %82 = dma.hbm_to_vmem [thread:$0]  %s75, 1024, %s77, [#allocation9], 64, 64, 4
    $region25: #{tpu_custom_call.1} parent=1 // pred_fallthru
      _
    // Predicated region
    $region26: #{tpu_custom_call.1} parent=1 // pred_check
      _
    $region27: #{tpu_custom_call.1} parent=1 // pred_check_branch
      %84 = sbr.rel (0) target = $region29
    $region28: #{tpu_custom_call.1} parent=1 // pred_region
      _
    $region29: #{tpu_custom_call.1} parent=1 // pred_fallthru
      _
    // Predicated region
    $region30: #{tpu_custom_call.1} parent=1 // pred_check
      _
    $region31: #{tpu_custom_call.1} parent=1 // pred_check_branch
      %86 = sbr.rel (0) target = $region33
    $region32: #{tpu_custom_call.1} parent=1 // pred_region
      %88 = dma.done [#allocation3], 256
    $region33: #{tpu_custom_call.1} parent=1 // pred_fallthru
      _
    // Predicated region
    $region34: #{tpu_custom_call.1} parent=1 // pred_check
      _
    $region35: #{tpu_custom_call.1} parent=1 // pred_check_branch
      %90 = sbr.rel (0) target = $region37
    $region36: #{tpu_custom_call.1} parent=1 // pred_region
      %92 = dma.done [#allocation6], 2048
    $region37: #{tpu_custom_call.1} parent=1 // pred_fallthru
      _
    // Predicated region
    $region38: #{tpu_custom_call.1} parent=1 // pred_check
      _
    $region39: #{tpu_custom_call.1} parent=1 // pred_check_branch
      %94 = sbr.rel (0) target = $region41
    $region40: #{tpu_custom_call.1} parent=1 // pred_region
      %96 = dma.done [#allocation6], 32
    $region41: #{tpu_custom_call.1} parent=1 // pred_fallthru
      _
    // Predicated region
    $region42: #{tpu_custom_call.1} parent=1 // pred_check
      _
    $region43: #{tpu_custom_call.1} parent=1 // pred_check_branch
      %98 = sbr.rel (0) target = $region45
    $region44: #{tpu_custom_call.1} parent=1 // pred_region
      %100 = dma.done [#allocation9], 32
    $region45: #{tpu_custom_call.1} parent=1 // pred_fallthru
      _
    // Predicated region
    $region46: #{tpu_custom_call.1} parent=1 // pred_check
      _
    $region47: #{tpu_custom_call.1} parent=1 // pred_check_branch
      %102 = sbr.rel (0) target = $region49
    $region48: #{tpu_custom_call.1} parent=1 // pred_region
      %104 = dma.done [#allocation9], 1024
    $region49: #{tpu_custom_call.1} parent=1 // pred_fallthru
      _
    %v105 = vld [vmem:[#allocation2] sm:$0xff]
    %v106 = vld [vmem:[#allocation2 + $0x8] sm:$0xff]
    %v107 = vpack.c.bf16 %v106, %v105
    %v108 = vld [vmem:[#allocation5] sm:$0xf]
    %v109 = vld [vmem:[#allocation5 + $0x4] sm:$0xf]
    %v110 = vld [vmem:[#allocation5 + $0x8] sm:$0xf]
    %v111 = vld [vmem:[#allocation5 + $0xc] sm:$0xf]
    %v112 = vld [vmem:[#allocation5 + $0x10] sm:$0xf]
    %v113 = vld [vmem:[#allocation5 + $0x14] sm:$0xf]
    %v114 = vld [vmem:[#allocation5 + $0x18] sm:$0xf]
    %v115 = vld [vmem:[#allocation5 + $0x1c] sm:$0xf]
    %v116 = vld [vmem:[#allocation5 + $0x20] sm:$0xf]
    %v117 = vld [vmem:[#allocation5 + $0x24] sm:$0xf]
    %v118 = vld [vmem:[#allocation5 + $0x28] sm:$0xf]
    %v119 = vld [vmem:[#allocation5 + $0x2c] sm:$0xf]
    %v120 = vld [vmem:[#allocation5 + $0x30] sm:$0xf]
    %v121 = vld [vmem:[#allocation5 + $0x34] sm:$0xf]
    %v122 = vld [vmem:[#allocation5 + $0x38] sm:$0xf]
    %v123 = vld [vmem:[#allocation5 + $0x3c] sm:$0xf]
    %v124 = vld [vmem:[#allocation7] sm:$0x1]
    %v126 = vperm.slane %v124, 0
    %v144 = vunpack.c.l.b16 %v108
    %v145 = vunpack.c.l.b16 %v109
    %v146 = vunpack.c.l.b16 %v110
    %v147 = vunpack.c.l.b16 %v111
    %v148 = vunpack.c.l.b16 %v112
    %v149 = vunpack.c.l.b16 %v113
    %v150 = vunpack.c.l.b16 %v114
    %v151 = vunpack.c.l.b16 %v115
    %v152 = vunpack.c.l.b16 %v116
    %v153 = vunpack.c.l.b16 %v117
    %v154 = vunpack.c.l.b16 %v118
    %v155 = vunpack.c.l.b16 %v119
    %v156 = vunpack.c.l.b16 %v120
    %v157 = vunpack.c.l.b16 %v121
    %v158 = vunpack.c.l.b16 %v122
    %v159 = vunpack.c.l.b16 %v123
    %v160 = vpack.c.b16 %v145, %v144
    %v161 = vpack.c.b16 %v147, %v146
    %v162 = vpack.c.b16 %v149, %v148
    %v163 = vpack.c.b16 %v151, %v150
    %v164 = vpack.c.b16 %v153, %v152
    %v165 = vpack.c.b16 %v155, %v154
    %v166 = vpack.c.b16 %v157, %v156
    %v167 = vpack.c.b16 %v159, %v158
    %176 = vmatpush.bf16.msra.mxu0 %v167
    %177 = vmatpush.bf16.msra.mxu0 %v166
    %178 = vmatpush.bf16.msra.mxu0 %v165
    %179 = vmatpush.bf16.msra.mxu0 %v164
    %180 = vmatpush.bf16.msra.mxu0 %v163
    %181 = vmatpush.bf16.msra.mxu0 %v162
    %182 = vmatpush.bf16.msra.mxu0 %v161
    %183 = vmatpush.bf16.msra.mxu0 %v160
    %184 = vmatmul.bf16.gmra.mxu0 %v107
    %v185 = vpop.f32.mrf.mxu0
    %v186 = vadd.f32 %v126, %v185
    %v187 = vpop.f32.mrf.mxu0
    %v188 = vadd.f32 %v126, %v187
    %189 = vdwg.mxu0
    %v190 = vadd.f32 %v186, %v105
    %v191 = vadd.f32 %v188, %v106
    %v192 = vld [vmem:[%s3] sm:$0x1]
    %v193 = vld [vmem:[#allocation8] sm:$0x1]
    %194 = vadd.xlane.f32.xlu0 %v190
    %v195 = vpop.xlane.xlu0 %194
    %196 = vadd.xlane.f32.xlu0 %v191
    %v197 = vpop.xlane.xlu0 %196
    %v198 = vrcp.pop 128.0
    %v199 = vmul.f32 128.0, %v198
    %v200 = vsub.f32 1.0, %v199
    %v201 = vmul.f32 %v198, %v200
    %v202 = vadd.f32 %v198, %v201
    %vm203 = vweird.f32 %v198
    %v204 = vsel %vm203, %v198, %v202
    %v205 = vmul.f32 %v195, %v204
    %v206 = vmul.f32 %v197, %v204
    %v207 = vmul.f32 %v190, %v190
    %v208 = vmul.f32 %v191, %v191
    %209 = vadd.xlane.f32.xlu0 %v207
    %v210 = vpop.xlane.xlu0 %209
    %211 = vadd.xlane.f32.xlu0 %v208
    %v212 = vpop.xlane.xlu0 %211
    %v213 = vmul.f32 %v210, %v204
    %v214 = vmul.f32 %v212, %v204
    %v215 = vmul.f32 %v205, %v205
    %v216 = vmul.f32 %v206, %v206
    %v217 = vsub.f32 %v213, %v215
    %v218 = vsub.f32 %v214, %v216
    %v219 = vadd.f32 %v217, 1e-05
    %v220 = vadd.f32 %v218, 1e-05
    %v221 = vrsqrt.pop %v219
    %v222 = vmul.f32 %v221, %v219
    %v223 = vmul.f32 %v222, %v221
    %v224 = vmul.f32 0.5, %v223
    %v225 = vsub.f32 1.5, %v224
    %v226 = vmul.f32 %v221, %v225
    %vm227 = vweird.f32 %v219
    %vm228 = vweird.f32 %v221
    %vm229 = vmor %vm227, %vm228
    %v230 = vsel %vm229, %v221, %v226
    %v231 = vrsqrt.pop %v220
    %v232 = vmul.f32 %v231, %v220
    %v233 = vmul.f32 %v232, %v231
    %v234 = vmul.f32 0.5, %v233
    %v235 = vsub.f32 1.5, %v234
    %v236 = vmul.f32 %v231, %v235
    %vm237 = vweird.f32 %v220
    %vm238 = vweird.f32 %v231
    %vm239 = vmor %vm237, %vm238
    %v240 = vsel %vm239, %v231, %v236
    %v242 = vperm.slane %v192, 0
    %v244 = vmul.f32 %v230, %v242
    %v245 = vmul.f32 %v240, %v242
    %v246 = vmul.f32 %v205, %v244
    %v247 = vmul.f32 %v206, %v245
    %v249 = vperm.slane %v193, 0
    %v251 = vsub.f32 %v249, %v246
    %v252 = vsub.f32 %v249, %v247
    %v253 = vmul.f32 %v190, %v244
    %v254 = vmul.f32 %v191, %v245
    %v255 = vadd.f32 %v253, %v251
    %v256 = vadd.f32 %v254, %v252
    %v257 = vmax.f32 %v255, 0.0
    %v258 = vmax.f32 %v256, 0.0
    %v259 = vpack.c.bf16 %v258, %v257
    %s260 = scalar_lea.vmem [#allocation5], 64
    %v261 = vld [vmem:[%s260] sm:$0xf]
    %v262 = vld [vmem:[%s260 + $0x4] sm:$0xf]
    %v263 = vld [vmem:[%s260 + $0x8] sm:$0xf]
    %v264 = vld [vmem:[%s260 + $0xc] sm:$0xf]
    %v265 = vld [vmem:[%s260 + $0x10] sm:$0xf]
    %v266 = vld [vmem:[%s260 + $0x14] sm:$0xf]
    %v267 = vld [vmem:[%s260 + $0x18] sm:$0xf]
    %v268 = vld [vmem:[%s260 + $0x1c] sm:$0xf]
    %v269 = vld [vmem:[%s260 + $0x20] sm:$0xf]
    %v270 = vld [vmem:[%s260 + $0x24] sm:$0xf]
    %v271 = vld [vmem:[%s260 + $0x28] sm:$0xf]
    %v272 = vld [vmem:[%s260 + $0x2c] sm:$0xf]
    %v273 = vld [vmem:[%s260 + $0x30] sm:$0xf]
    %v274 = vld [vmem:[%s260 + $0x34] sm:$0xf]
    %v275 = vld [vmem:[%s260 + $0x38] sm:$0xf]
    %v276 = vld [vmem:[%s260 + $0x3c] sm:$0xf]
    %s277 = scalar_lea.vmem [#allocation7], 1
    %v278 = vld [vmem:[%s277] sm:$0x1]
    %v280 = vperm.slane %v278, 0
    %v298 = vunpack.c.l.b16 %v261
    %v299 = vunpack.c.l.b16 %v262
    %v300 = vunpack.c.l.b16 %v263
    %v301 = vunpack.c.l.b16 %v264
    %v302 = vunpack.c.l.b16 %v265
    %v303 = vunpack.c.l.b16 %v266
    %v304 = vunpack.c.l.b16 %v267
    %v305 = vunpack.c.l.b16 %v268
    %v306 = vunpack.c.l.b16 %v269
    %v307 = vunpack.c.l.b16 %v270
    %v308 = vunpack.c.l.b16 %v271
    %v309 = vunpack.c.l.b16 %v272
    %v310 = vunpack.c.l.b16 %v273
    %v311 = vunpack.c.l.b16 %v274
    %v312 = vunpack.c.l.b16 %v275
    %v313 = vunpack.c.l.b16 %v276
    %v314 = vpack.c.b16 %v299, %v298
    %v315 = vpack.c.b16 %v301, %v300
    %v316 = vpack.c.b16 %v303, %v302
    %v317 = vpack.c.b16 %v305, %v304
    %v318 = vpack.c.b16 %v307, %v306
    %v319 = vpack.c.b16 %v309, %v308
    %v320 = vpack.c.b16 %v311, %v310
    %v321 = vpack.c.b16 %v313, %v312
    %330 = vmatpush.bf16.msra.mxu0 %v321
    %331 = vmatpush.bf16.msra.mxu0 %v320
    %332 = vmatpush.bf16.msra.mxu0 %v319
    %333 = vmatpush.bf16.msra.mxu0 %v318
    %334 = vmatpush.bf16.msra.mxu0 %v317
    %335 = vmatpush.bf16.msra.mxu0 %v316
    %336 = vmatpush.bf16.msra.mxu0 %v315
    %337 = vmatpush.bf16.msra.mxu0 %v314
    %338 = vmatmul.bf16.gmra.mxu0 %v259
    %v339 = vpop.f32.mrf.mxu0
    %v340 = vadd.f32 %v280, %v339
    %v341 = vpop.f32.mrf.mxu0
    %v342 = vadd.f32 %v280, %v341
    %343 = vdwg.mxu0
    %v344 = vadd.f32 %v340, %v257
    %v345 = vadd.f32 %v342, %v258
    %s346 = scalar_lea.vmem %s3, 1
    %v347 = vld [vmem:[%s346] sm:$0x1]
    %s348 = scalar_lea.vmem [#allocation8], 1
    %v349 = vld [vmem:[%s348] sm:$0x1]
    %350 = vadd.xlane.f32.xlu0 %v344
    %v351 = vpop.xlane.xlu0 %350
    %352 = vadd.xlane.f32.xlu0 %v345
    %v353 = vpop.xlane.xlu0 %352
    %v354 = vmul.f32 %v351, %v204
    %v355 = vmul.f32 %v353, %v204
    %v356 = vmul.f32 %v344, %v344
    %v357 = vmul.f32 %v345, %v345
    %358 = vadd.xlane.f32.xlu0 %v356
    %v359 = vpop.xlane.xlu0 %358
    %360 = vadd.xlane.f32.xlu0 %v357
    %v361 = vpop.xlane.xlu0 %360
    %v362 = vmul.f32 %v359, %v204
    %v363 = vmul.f32 %v361, %v204
    %v364 = vmul.f32 %v354, %v354
    %v365 = vmul.f32 %v355, %v355
    %v366 = vsub.f32 %v362, %v364
    %v367 = vsub.f32 %v363, %v365
    %v368 = vadd.f32 %v366, 1e-05
    %v369 = vadd.f32 %v367, 1e-05
    %v370 = vrsqrt.pop %v368
    %v371 = vmul.f32 %v370, %v368
    %v372 = vmul.f32 %v371, %v370
    %v373 = vmul.f32 0.5, %v372
    %v374 = vsub.f32 1.5, %v373
    %v375 = vmul.f32 %v370, %v374
    %vm376 = vweird.f32 %v368
    %vm377 = vweird.f32 %v370
    %vm378 = vmor %vm376, %vm377
    %v379 = vsel %vm378, %v370, %v375
    %v380 = vrsqrt.pop %v369
    %v381 = vmul.f32 %v380, %v369
    %v382 = vmul.f32 %v381, %v380
    %v383 = vmul.f32 0.5, %v382
    %v384 = vsub.f32 1.5, %v383
    %v385 = vmul.f32 %v380, %v384
    %vm386 = vweird.f32 %v369
    %vm387 = vweird.f32 %v380
    %vm388 = vmor %vm386, %vm387
    %v389 = vsel %vm388, %v380, %v385
    %v391 = vperm.slane %v347, 0
    %v393 = vmul.f32 %v379, %v391
    %v394 = vmul.f32 %v389, %v391
    %v395 = vmul.f32 %v354, %v393
    %v396 = vmul.f32 %v355, %v394
    %v398 = vperm.slane %v349, 0
    %v400 = vsub.f32 %v398, %v395
    %v401 = vsub.f32 %v398, %v396
    %v402 = vmul.f32 %v344, %v393
    %v403 = vmul.f32 %v345, %v394
    %v404 = vadd.f32 %v402, %v400
    %v405 = vadd.f32 %v403, %v401
    %v406 = vmax.f32 %v404, 0.0
    %v407 = vmax.f32 %v405, 0.0
    %v408 = vpack.c.bf16 %v407, %v406
    %v409 = vld [vmem:[#allocation10] sm:$0xf]
    %v410 = vld [vmem:[#allocation10 + $0x4] sm:$0xf]
    %v411 = vld [vmem:[#allocation10 + $0x8] sm:$0xf]
    %v412 = vld [vmem:[#allocation10 + $0xc] sm:$0xf]
    %v413 = vld [vmem:[#allocation10 + $0x10] sm:$0xf]
    %v414 = vld [vmem:[#allocation10 + $0x14] sm:$0xf]
    %v415 = vld [vmem:[#allocation10 + $0x18] sm:$0xf]
    %v416 = vld [vmem:[#allocation10 + $0x1c] sm:$0xf]
    %v417 = vld [vmem:[#allocation10 + $0x20] sm:$0xf]
    %v418 = vld [vmem:[#allocation10 + $0x24] sm:$0xf]
    %v419 = vld [vmem:[#allocation10 + $0x28] sm:$0xf]
    %v420 = vld [vmem:[#allocation10 + $0x2c] sm:$0xf]
    %v421 = vld [vmem:[#allocation10 + $0x30] sm:$0xf]
    %v422 = vld [vmem:[#allocation10 + $0x34] sm:$0xf]
    %v423 = vld [vmem:[#allocation10 + $0x38] sm:$0xf]
    %v424 = vld [vmem:[#allocation10 + $0x3c] sm:$0xf]
    %v425 = vld [vmem:[%s6] sm:$0x1]
    %v427 = vperm.slane %v425, 0
    %v445 = vunpack.c.l.b16 %v409
    %v446 = vunpack.c.l.b16 %v410
    %v447 = vunpack.c.l.b16 %v411
    %v448 = vunpack.c.l.b16 %v412
    %v449 = vunpack.c.l.b16 %v413
    %v450 = vunpack.c.l.b16 %v414
    %v451 = vunpack.c.l.b16 %v415
    %v452 = vunpack.c.l.b16 %v416
    %v453 = vunpack.c.l.b16 %v417
    %v454 = vunpack.c.l.b16 %v418
    %v455 = vunpack.c.l.b16 %v419
    %v456 = vunpack.c.l.b16 %v420
    %v457 = vunpack.c.l.b16 %v421
    %v458 = vunpack.c.l.b16 %v422
    %v459 = vunpack.c.l.b16 %v423
    %v460 = vunpack.c.l.b16 %v424
    %v461 = vpack.c.b16 %v446, %v445
    %v462 = vpack.c.b16 %v448, %v447
    %v463 = vpack.c.b16 %v450, %v449
    %v464 = vpack.c.b16 %v452, %v451
    %v465 = vpack.c.b16 %v454, %v453
    %v466 = vpack.c.b16 %v456, %v455
    %v467 = vpack.c.b16 %v458, %v457
    %v468 = vpack.c.b16 %v460, %v459
    %477 = vmatpush.bf16.msra.mxu0 %v468
    %478 = vmatpush.bf16.msra.mxu0 %v467
    %479 = vmatpush.bf16.msra.mxu0 %v466
    %480 = vmatpush.bf16.msra.mxu0 %v465
    %481 = vmatpush.bf16.msra.mxu0 %v464
    %482 = vmatpush.bf16.msra.mxu0 %v463
    %483 = vmatpush.bf16.msra.mxu0 %v462
    %484 = vmatpush.bf16.msra.mxu0 %v461
    %485 = vmatmul.bf16.gmra.mxu0 %v408
    %v486 = vpop.f32.mrf.mxu0
    %v487 = vadd.f32 %v427, %v486
    %v488 = vpop.f32.mrf.mxu0
    %v489 = vadd.f32 %v427, %v488
    %490 = vdwg.mxu0
    %491 = vst [vmem:[#allocation11] sm:$0xff] %v487
    %492 = vst [vmem:[#allocation11 + $0x8] sm:$0xff] %v489
    // Predicated region
    $region50: #{tpu_custom_call.1} parent=1 // pred_check
      _
    $region51: #{tpu_custom_call.1} parent=1 // pred_check_branch
      %494 = sbr.rel (0) target = $region53
    $region52: #{tpu_custom_call.1} parent=1 // pred_region
      %496 = vsyncadd [#allocation4], 0
      %s497 = sshll.u32 [#allocation11], 4
      %s498 = int_to_ptr.vmem [resolvable:$true] %s497
      %s499 = sshll.u32 %s7, 4
      %s500 = int_to_ptr.hbm [resolvable:$true] %s499
      %505 = dma.vmem_to_hbm [thread:$0]  %s498, 256, %s500, [#allocation4], 128, 128, 8
    $region53: #{tpu_custom_call.1} parent=1 // pred_fallthru
      _
    // Predicated region
    $region54: #{tpu_custom_call.1} parent=1 // pred_check
      _
    $region55: #{tpu_custom_call.1} parent=1 // pred_check_branch
      %507 = sbr.rel (0) target = $region57
    $region56: #{tpu_custom_call.1} parent=1 // pred_region
      %509 = dma.done [#allocation4], 256
    $region57: #{tpu_custom_call.1} parent=1 // pred_fallthru
      _
    %510 = vsyncpa [#allocation3], 1
    %511 = vsyncpa [#allocation6], 1
    %512 = vsyncpa [#allocation9], 1
    %513 = vsyncpa [#allocation4], 1

</llo_original>
